<compile_context>
chip_gen: v6e
topology: v6e:2x2x1
jax: 0.10.0
libtpu: 0.0.40
codegen_flags: <defaults>
</compile_context>

<pallas_src>
import functools

import jax
import jax.numpy as jnp
import numpy as np
from jax import lax
from jax.experimental import pallas as pl
from jax.experimental.pallas import tpu as pltpu

# Problem sizes (small, TPU-tile friendly)
N_ATOMS = 64          # number of atoms
K_RBF = 128           # radial-basis centers (descriptor width, lane-dense)
H_HID = 128           # MLP hidden width
HEAD_W = 128          # merged head width: lanes 0..2 = force, lane 3 = energy
FORCE_COLS = 3
ENERGY_COL = 3
NEIGHBOR_LANES = 128  # neighbour axis duplicated to the native lane width
BLK = 8               # neighbour columns per rolled block (partial unroll)

# Physical / model constants (forward() defaults: cutoff=3, min_distance=1)
BOX = 10.0
INV_BOX = 1.0 / BOX
CUTOFF = 3.0
MIN_DIST = 1.0
SIGMA = 0.5
INV_S2 = 1.0 / (SIGMA * SIGMA)
NEG_INV_S2 = -INV_S2
BIG_DIST = 1.0e3      # sentinel for masked pairs: exp(-4*(1e3-mu)^2) == 0


def _tpu_flavor():
    """(bf16_rbf_ok, two_tensorcores) from the device kind string.

    bf16 EUP/VPU exists on v6e / v7x; two TensorCores per chip only on v7x.
    Unknown / future devices fall back to the safe f32 single-core path.
    """
    try:
        kind = jax.devices()[0].device_kind.lower()
    except Exception:
        return False, False
    is_v7 = ("v7" in kind) or ("7x" in kind)
    is_v6 = "v6" in kind
    return (is_v6 or is_v7), is_v7


def mlf_kernel(pos_ref, post_ref, mu_ref, w1_ref, b1_ref, whead_ref, head_ref,
               *, n_neighbors, blk, compute_dtype):
    tile_i = pos_ref.shape[0]

    # ---- lane-dense geometry pre-pass: one (tile_i, 128) block -------------
    px = pos_ref[:, 0:1]                     # (tile_i, 1) f32
    py = pos_ref[:, 1:2]
    pz = pos_ref[:, 2:3]
    qx = post_ref[0:1, :]                    # (1, 128) f32 (duplicated atoms)
    qy = post_ref[1:2, :]
    qz = post_ref[2:3, :]
    dx = px - qx                             # (tile_i, 128)
    dy = py - qy
    dz = pz - qz
    # Minimum-image wrap (cubic box); floor(x+0.5) == round except exact ties.
    dx = dx - BOX * jnp.floor(dx * INV_BOX + 0.5)
    dy = dy - BOX * jnp.floor(dy * INV_BOX + 0.5)
    dz = dz - BOX * jnp.floor(dz * INV_BOX + 0.5)
    dist = jnp.sqrt(dx * dx + dy * dy + dz * dz + 1e-12)   # (tile_i, 128) f32
    # Fold the neighbour mask into the distance: out-of-range pairs (and the
    # i == j self pair, dist == 1e-6 < MIN_DIST) get a huge sentinel, so their
    # Gaussian RBF underflows to exactly 0 in the loop below.
    in_range = jnp.logical_and(dist > MIN_DIST, dist < CUTOFF)
    dmat = jnp.where(in_range, dist, BIG_DIST)

    mu = mu_ref[...]                                        # (1, K) f32

    def outer(_, carry):
        desc, dm = carry
        for t in range(blk):                                # static lane slices
            dj = dm[:, t:t + 1]                             # (tile_i, 1) f32
            diff = (dj - mu).astype(compute_dtype)          # (tile_i, K)
            # square / scale / exp in compute_dtype (bf16 on v6e/v7x, EUP exp);
            # masked pairs: exp(-4*(1e3 - mu)^2) == 0, so no mask multiply.
            rbf = jnp.exp((diff * diff) * NEG_INV_S2)
            desc = desc + rbf.astype(jnp.float32)           # f32 accumulation
        # Bring the next blk neighbour columns to lanes 0..blk-1.  Because the
        # 64 atoms are duplicated across the 128 lanes, either rotate direction
        # visits every real atom exactly once over n_neighbors // blk steps.
        dm = pltpu.roll(dm, shift=blk, axis=1)
        return desc, dm

    desc0 = jnp.zeros((tile_i, K_RBF), jnp.float32)
    desc, _ = lax.fori_loop(0, n_neighbors // blk, outer, (desc0, dmat))

    # Per-atom MLP: hidden layer + merged (force | energy) head.
    # bf16 operands feed the MXU at full rate; accumulation stays f32.
    h = jnp.dot(desc.astype(jnp.bfloat16), w1_ref[...],
                preferred_element_type=jnp.float32) + b1_ref[...]
    h = jnp.maximum(h, 0.0)                                 # (tile_i, H) f32
    out = jnp.dot(h.astype(jnp.bfloat16), whead_ref[...],
                  preferred_element_type=jnp.float32)       # (tile_i, 128) f32
    head_ref[...] = out                                     # lane-dense store


def machine_learning_force(atom_coordinates, params, compute_dtype=None,
                           tile_i=None):
    """Returns {'energy': scalar f32, 'forces': (N, 3) f32}, like the module."""
    mu, w1, b1, w_head = params
    bf16_ok, two_cores = _tpu_flavor()
    if compute_dtype is None:
        compute_dtype = jnp.bfloat16 if bf16_ok else jnp.float32

    pos = atom_coordinates.astype(jnp.float32)              # (N, 3)
    n = pos.shape[0]
    assert n % BLK == 0 and NEIGHBOR_LANES % n == 0
    assert mu.shape == (1, K_RBF)

    if tile_i is None:
        # Single-TC parts (v5e/v6e): one big tile, grid=(1,) -> no pipeline
        # step overhead and full MXU row occupancy.  v7x: two tiles, one per
        # TensorCore via dimension_semantics=("parallel",).
        tile_i = 32 if (two_cores and n > 32 and n % 32 == 0) else n
    assert n % tile_i == 0
    grid_i = n // tile_i

    # Neighbour positions transposed and duplicated to the native 128-lane
    # width (roll-direction-agnostic neighbour walk in the kernel).
    reps = NEIGHBOR_LANES // n
    post = jnp.tile(pos.T, (1, reps))                        # (3, 128) f32

    # Halve the weight DMA / VMEM footprint: MXU operands are bf16 anyway.
    w1_b = w1.astype(jnp.bfloat16)
    w_head_b = w_head.astype(jnp.bfloat16)

    flops = (n * NEIGHBOR_LANES * 20          # lane-dense geometry pre-pass
             + n * n * K_RBF * 4              # RBF diff / square / scale / acc
             + 2 * n * K_RBF * H_HID          # desc @ w1
             + 2 * n * H_HID * HEAD_W)        # h @ merged head
    transcendentals = n * n * K_RBF + n * NEIGHBOR_LANES     # exp + sqrt
    bytes_accessed = (4 * (pos.size + post.size + mu.size + b1.size)
                      + 2 * (w1_b.size + w_head_b.size)
                      + 4 * n * HEAD_W)

    head = pl.pallas_call(
        functools.partial(mlf_kernel, n_neighbors=n, blk=BLK,
                          compute_dtype=compute_dtype),
        out_shape=jax.ShapeDtypeStruct((n, HEAD_W), jnp.float32),
        grid=(grid_i,),
        in_specs=[
            pl.BlockSpec((tile_i, 3), lambda i: (i, 0)),           # pos i-tile
            pl.BlockSpec((3, NEIGHBOR_LANES), lambda i: (0, 0)),   # pos^T dup
            pl.BlockSpec((1, K_RBF), lambda i: (0, 0)),            # mu
            pl.BlockSpec((K_RBF, H_HID), lambda i: (0, 0)),        # w1 (bf16)
            pl.BlockSpec((1, H_HID), lambda i: (0, 0)),            # b1
            pl.BlockSpec((H_HID, HEAD_W), lambda i: (0, 0)),       # head (bf16)
        ],
        out_specs=pl.BlockSpec((tile_i, HEAD_W), lambda i: (i, 0)),
        compiler_params=pltpu.CompilerParams(
            dimension_semantics=("parallel",)),
        cost_estimate=pl.CostEstimate(
            flops=flops, transcendentals=transcendentals,
            bytes_accessed=bytes_accessed),
    )(pos, post, mu, w1_b, b1, w_head_b)

    # Energy head lives in lane 3 of the merged lane-dense output; the final
    # N-element scalar sum is trivial glue (avoids an (8,128) scalar tile).
    energy = jnp.sum(head[:, ENERGY_COL])
    forces = head[:, :FORCE_COLS]
    return {"energy": energy, "forces": forces}


def reference_force(atom_coordinates, params):
    """Plain-JAX reference with identical math (f32 RBF) for correctness check."""
    mu, w1, b1, w_head = params
    pos = atom_coordinates.astype(jnp.float32)
    d = pos[:, None, :] - pos[None, :, :]
    d = d - BOX * jnp.floor(d * INV_BOX + 0.5)
    dist = jnp.sqrt(jnp.sum(d * d, axis=-1) + 1e-12)
    mask = jnp.logical_and(dist > MIN_DIST, dist < CUTOFF).astype(jnp.float32)
    rbf = jnp.exp(-(dist[:, :, None] - mu[None, :, :]) ** 2 * INV_S2)
    desc = jnp.sum(rbf * mask[:, :, None], axis=1)
    # Same bf16 MXU precision as the kernel (f32 accumulation).
    h = jnp.maximum(
        jnp.dot(desc.astype(jnp.bfloat16), w1.astype(jnp.bfloat16),
                preferred_element_type=jnp.float32) + b1, 0.0)
    out = jnp.dot(h.astype(jnp.bfloat16), w_head.astype(jnp.bfloat16),
                  preferred_element_type=jnp.float32)
    return {"energy": jnp.sum(out[:, ENERGY_COL]), "forces": out[:, :FORCE_COLS]}


def make_params():
    key = jax.random.PRNGKey(0)
    k_w1, k_wh = jax.random.split(key, 2)
    mu = jnp.linspace(MIN_DIST, CUTOFF, K_RBF, dtype=jnp.float32).reshape(1, K_RBF)
    w1 = 0.05 * jax.random.normal(k_w1, (K_RBF, H_HID), jnp.float32)
    b1 = jnp.zeros((1, H_HID), jnp.float32)
    # Merged output head: lanes 0..2 = force components, lane 3 = per-atom energy.
    w_head = 0.05 * jax.random.normal(k_wh, (H_HID, HEAD_W), jnp.float32)
    return mu, w1, b1, w_head


if __name__ == "__main__":
    params = make_params()
    key = jax.random.PRNGKey(0)
    atom_coordinates = jax.random.uniform(
        key, (N_ATOMS, 3), jnp.float32, minval=0.0, maxval=BOX)

    bf16_ok, _ = _tpu_flavor()
    compute_dtype = jnp.bfloat16 if bf16_ok else jnp.float32

    out = machine_learning_force(atom_coordinates, params, compute_dtype)
    jax.block_until_ready(out)

    ref = reference_force(atom_coordinates, params)
    if compute_dtype == jnp.bfloat16:
        # bf16 square/scale/exp in the RBF vs f32 reference: per-atom values
        # differ by O(1%); energy is a sum over 64 atoms, hence a looser atol.
        e_tol = dict(rtol=3e-2, atol=2e-1)
        f_tol = dict(rtol=3e-2, atol=3e-2)
    else:
        e_tol = dict(rtol=1e-3, atol=1e-3)
        f_tol = dict(rtol=1e-3, atol=1e-3)
    np.testing.assert_allclose(np.asarray(out["energy"]),
                               np.asarray(ref["energy"]), **e_tol)
    np.testing.assert_allclose(np.asarray(out["forces"]),
                               np.asarray(ref["forces"]), **f_tol)

    assert out["forces"].shape == (N_ATOMS, 3)
    print("KERNEL_OK")
</pallas_src>

<mosaic_0001>
module attributes {stable_mosaic.version = 11 : i64} {
  func.func @mlf_kernel(%arg0: i32, %arg1: memref<64x3xf32, #tpu.memory_space<vmem>>, %arg2: memref<3x128xf32, #tpu.memory_space<vmem>>, %arg3: memref<1x128xf32, #tpu.memory_space<vmem>>, %arg4: memref<128x128xbf16, #tpu.memory_space<vmem>>, %arg5: memref<1x128xf32, #tpu.memory_space<vmem>>, %arg6: memref<128x128xbf16, #tpu.memory_space<vmem>>, %arg7: memref<64x128xf32, #tpu.memory_space<vmem>>) attributes {dimension_semantics = [#tpu.dimension_semantics<parallel>], iteration_bounds = array<i64: 1>, scalar_prefetch = 0 : i64, scratch_operands = 0 : i64, tpu.core_type = #tpu.core_type<tc>, window_params = [{transform_indices = @transform_0, window_bounds = array<i64: 64, 3>}, {pipeline_mode = #tpu.pipeline_mode<synchronous>, transform_indices = @transform_1, window_bounds = array<i64: 3, 128>}, {pipeline_mode = #tpu.pipeline_mode<synchronous>, transform_indices = @transform_2, window_bounds = array<i64: 1, 128>}, {pipeline_mode = #tpu.pipeline_mode<synchronous>, transform_indices = @transform_3, window_bounds = array<i64: 128, 128>}, {pipeline_mode = #tpu.pipeline_mode<synchronous>, transform_indices = @transform_4, window_bounds = array<i64: 1, 128>}, {pipeline_mode = #tpu.pipeline_mode<synchronous>, transform_indices = @transform_5, window_bounds = array<i64: 128, 128>}, {transform_indices = @transform_6, window_bounds = array<i64: 64, 128>}]} {
    %c0 = arith.constant 0 : index
    %c0_0 = arith.constant 0 : index
    %0 = vector.load %arg1[%c0, %c0_0] : memref<64x3xf32, #tpu.memory_space<vmem>>, vector<64x1xf32>
    %c0_1 = arith.constant 0 : index
    %c1 = arith.constant 1 : index
    %1 = vector.load %arg1[%c0_1, %c1] : memref<64x3xf32, #tpu.memory_space<vmem>>, vector<64x1xf32>
    %c0_2 = arith.constant 0 : index
    %c2 = arith.constant 2 : index
    %2 = vector.load %arg1[%c0_2, %c2] : memref<64x3xf32, #tpu.memory_space<vmem>>, vector<64x1xf32>
    %c0_3 = arith.constant 0 : index
    %c0_4 = arith.constant 0 : index
    %3 = vector.load %arg2[%c0_3, %c0_4] : memref<3x128xf32, #tpu.memory_space<vmem>>, vector<1x128xf32>
    %c1_5 = arith.constant 1 : index
    %c0_6 = arith.constant 0 : index
    %4 = vector.load %arg2[%c1_5, %c0_6] : memref<3x128xf32, #tpu.memory_space<vmem>>, vector<1x128xf32>
    %c2_7 = arith.constant 2 : index
    %c0_8 = arith.constant 0 : index
    %5 = vector.load %arg2[%c2_7, %c0_8] : memref<3x128xf32, #tpu.memory_space<vmem>>, vector<1x128xf32>
    %6 = vector.broadcast %0 : vector<64x1xf32> to vector<64x128xf32>
    %7 = vector.broadcast %3 : vector<1x128xf32> to vector<64x128xf32>
    %8 = arith.subf %6, %7 : vector<64x128xf32>
    %9 = vector.broadcast %1 : vector<64x1xf32> to vector<64x128xf32>
    %10 = vector.broadcast %4 : vector<1x128xf32> to vector<64x128xf32>
    %11 = arith.subf %9, %10 : vector<64x128xf32>
    %12 = vector.broadcast %2 : vector<64x1xf32> to vector<64x128xf32>
    %13 = vector.broadcast %5 : vector<1x128xf32> to vector<64x128xf32>
    %14 = arith.subf %12, %13 : vector<64x128xf32>
    %cst = arith.constant 1.000000e-01 : f32
    %15 = vector.broadcast %cst : f32 to vector<64x128xf32>
    %16 = arith.mulf %8, %15 : vector<64x128xf32>
    %cst_9 = arith.constant 5.000000e-01 : f32
    %17 = vector.broadcast %cst_9 : f32 to vector<64x128xf32>
    %18 = arith.addf %16, %17 : vector<64x128xf32>
    %19 = math.floor %18 : vector<64x128xf32>
    %cst_10 = arith.constant 1.000000e+01 : f32
    %20 = vector.broadcast %cst_10 : f32 to vector<64x128xf32>
    %21 = arith.mulf %20, %19 : vector<64x128xf32>
    %22 = arith.subf %8, %21 : vector<64x128xf32>
    %cst_11 = arith.constant 1.000000e-01 : f32
    %23 = vector.broadcast %cst_11 : f32 to vector<64x128xf32>
    %24 = arith.mulf %11, %23 : vector<64x128xf32>
    %cst_12 = arith.constant 5.000000e-01 : f32
    %25 = vector.broadcast %cst_12 : f32 to vector<64x128xf32>
    %26 = arith.addf %24, %25 : vector<64x128xf32>
    %27 = math.floor %26 : vector<64x128xf32>
    %cst_13 = arith.constant 1.000000e+01 : f32
    %28 = vector.broadcast %cst_13 : f32 to vector<64x128xf32>
    %29 = arith.mulf %28, %27 : vector<64x128xf32>
    %30 = arith.subf %11, %29 : vector<64x128xf32>
    %cst_14 = arith.constant 1.000000e-01 : f32
    %31 = vector.broadcast %cst_14 : f32 to vector<64x128xf32>
    %32 = arith.mulf %14, %31 : vector<64x128xf32>
    %cst_15 = arith.constant 5.000000e-01 : f32
    %33 = vector.broadcast %cst_15 : f32 to vector<64x128xf32>
    %34 = arith.addf %32, %33 : vector<64x128xf32>
    %35 = math.floor %34 : vector<64x128xf32>
    %cst_16 = arith.constant 1.000000e+01 : f32
    %36 = vector.broadcast %cst_16 : f32 to vector<64x128xf32>
    %37 = arith.mulf %36, %35 : vector<64x128xf32>
    %38 = arith.subf %14, %37 : vector<64x128xf32>
    %39 = arith.mulf %22, %22 : vector<64x128xf32>
    %40 = arith.mulf %30, %30 : vector<64x128xf32>
    %41 = arith.addf %39, %40 : vector<64x128xf32>
    %42 = arith.mulf %38, %38 : vector<64x128xf32>
    %43 = arith.addf %41, %42 : vector<64x128xf32>
    %cst_17 = arith.constant 9.99999996E-13 : f32
    %44 = vector.broadcast %cst_17 : f32 to vector<64x128xf32>
    %45 = arith.addf %43, %44 : vector<64x128xf32>
    %46 = math.sqrt %45 : vector<64x128xf32>
    %cst_18 = arith.constant 1.000000e+00 : f32
    %47 = vector.broadcast %cst_18 : f32 to vector<64x128xf32>
    %48 = arith.cmpf ogt, %46, %47 : vector<64x128xf32>
    %cst_19 = arith.constant 3.000000e+00 : f32
    %49 = vector.broadcast %cst_19 : f32 to vector<64x128xf32>
    %50 = arith.cmpf olt, %46, %49 : vector<64x128xf32>
    %51 = arith.andi %48, %50 : vector<64x128xi1>
    %cst_20 = arith.constant 1.000000e+03 : f32
    %52 = vector.broadcast %cst_20 : f32 to vector<64x128xf32>
    %53 = arith.select %51, %46, %52 : vector<64x128xi1>, vector<64x128xf32>
    %c0_21 = arith.constant 0 : index
    %c0_22 = arith.constant 0 : index
    %54 = vector.load %arg3[%c0_21, %c0_22] : memref<1x128xf32, #tpu.memory_space<vmem>>, vector<1x128xf32>
    %cst_23 = arith.constant 0.000000e+00 : f32
    %55 = vector.broadcast %cst_23 : f32 to vector<64x128xf32>
    %c0_i32 = arith.constant 0 : i32
    %c8_i32 = arith.constant 8 : i32
    %56 = arith.addi %c0_i32, %c8_i32 : i32
    %c1_i32 = arith.constant 1 : i32
    %57:2 = scf.for %arg8 = %c0_i32 to %56 step %c1_i32 iter_args(%arg9 = %55, %arg10 = %53) -> (vector<64x128xf32>, vector<64x128xf32>)  : i32 {
      %70 = vector.extract_strided_slice %arg10 {offsets = [0, 0], sizes = [64, 1], strides = [1, 1]} : vector<64x128xf32> to vector<64x1xf32>
      %71 = vector.broadcast %70 : vector<64x1xf32> to vector<64x128xf32>
      %72 = vector.broadcast %54 : vector<1x128xf32> to vector<64x128xf32>
      %73 = arith.subf %71, %72 : vector<64x128xf32>
      %74 = arith.mulf %73, %73 : vector<64x128xf32>
      %cst_35 = arith.constant -4.000000e+00 : f32
      %75 = vector.broadcast %cst_35 : f32 to vector<64x128xf32>
      %76 = arith.mulf %74, %75 : vector<64x128xf32>
      %77 = math.exp %76 : vector<64x128xf32>
      %78 = arith.addf %arg9, %77 : vector<64x128xf32>
      %79 = vector.extract_strided_slice %arg10 {offsets = [0, 1], sizes = [64, 1], strides = [1, 1]} : vector<64x128xf32> to vector<64x1xf32>
      %80 = vector.broadcast %79 : vector<64x1xf32> to vector<64x128xf32>
      %81 = vector.broadcast %54 : vector<1x128xf32> to vector<64x128xf32>
      %82 = arith.subf %80, %81 : vector<64x128xf32>
      %83 = arith.mulf %82, %82 : vector<64x128xf32>
      %cst_36 = arith.constant -4.000000e+00 : f32
      %84 = vector.broadcast %cst_36 : f32 to vector<64x128xf32>
      %85 = arith.mulf %83, %84 : vector<64x128xf32>
      %86 = math.exp %85 : vector<64x128xf32>
      %87 = arith.addf %78, %86 : vector<64x128xf32>
      %88 = vector.extract_strided_slice %arg10 {offsets = [0, 2], sizes = [64, 1], strides = [1, 1]} : vector<64x128xf32> to vector<64x1xf32>
      %89 = vector.broadcast %88 : vector<64x1xf32> to vector<64x128xf32>
      %90 = vector.broadcast %54 : vector<1x128xf32> to vector<64x128xf32>
      %91 = arith.subf %89, %90 : vector<64x128xf32>
      %92 = arith.mulf %91, %91 : vector<64x128xf32>
      %cst_37 = arith.constant -4.000000e+00 : f32
      %93 = vector.broadcast %cst_37 : f32 to vector<64x128xf32>
      %94 = arith.mulf %92, %93 : vector<64x128xf32>
      %95 = math.exp %94 : vector<64x128xf32>
      %96 = arith.addf %87, %95 : vector<64x128xf32>
      %97 = vector.extract_strided_slice %arg10 {offsets = [0, 3], sizes = [64, 1], strides = [1, 1]} : vector<64x128xf32> to vector<64x1xf32>
      %98 = vector.broadcast %97 : vector<64x1xf32> to vector<64x128xf32>
      %99 = vector.broadcast %54 : vector<1x128xf32> to vector<64x128xf32>
      %100 = arith.subf %98, %99 : vector<64x128xf32>
      %101 = arith.mulf %100, %100 : vector<64x128xf32>
      %cst_38 = arith.constant -4.000000e+00 : f32
      %102 = vector.broadcast %cst_38 : f32 to vector<64x128xf32>
      %103 = arith.mulf %101, %102 : vector<64x128xf32>
      %104 = math.exp %103 : vector<64x128xf32>
      %105 = arith.addf %96, %104 : vector<64x128xf32>
      %106 = vector.extract_strided_slice %arg10 {offsets = [0, 4], sizes = [64, 1], strides = [1, 1]} : vector<64x128xf32> to vector<64x1xf32>
      %107 = vector.broadcast %106 : vector<64x1xf32> to vector<64x128xf32>
      %108 = vector.broadcast %54 : vector<1x128xf32> to vector<64x128xf32>
      %109 = arith.subf %107, %108 : vector<64x128xf32>
      %110 = arith.mulf %109, %109 : vector<64x128xf32>
      %cst_39 = arith.constant -4.000000e+00 : f32
      %111 = vector.broadcast %cst_39 : f32 to vector<64x128xf32>
      %112 = arith.mulf %110, %111 : vector<64x128xf32>
      %113 = math.exp %112 : vector<64x128xf32>
      %114 = arith.addf %105, %113 : vector<64x128xf32>
      %115 = vector.extract_strided_slice %arg10 {offsets = [0, 5], sizes = [64, 1], strides = [1, 1]} : vector<64x128xf32> to vector<64x1xf32>
      %116 = vector.broadcast %115 : vector<64x1xf32> to vector<64x128xf32>
      %117 = vector.broadcast %54 : vector<1x128xf32> to vector<64x128xf32>
      %118 = arith.subf %116, %117 : vector<64x128xf32>
      %119 = arith.mulf %118, %118 : vector<64x128xf32>
      %cst_40 = arith.constant -4.000000e+00 : f32
      %120 = vector.broadcast %cst_40 : f32 to vector<64x128xf32>
      %121 = arith.mulf %119, %120 : vector<64x128xf32>
      %122 = math.exp %121 : vector<64x128xf32>
      %123 = arith.addf %114, %122 : vector<64x128xf32>
      %124 = vector.extract_strided_slice %arg10 {offsets = [0, 6], sizes = [64, 1], strides = [1, 1]} : vector<64x128xf32> to vector<64x1xf32>
      %125 = vector.broadcast %124 : vector<64x1xf32> to vector<64x128xf32>
      %126 = vector.broadcast %54 : vector<1x128xf32> to vector<64x128xf32>
      %127 = arith.subf %125, %126 : vector<64x128xf32>
      %128 = arith.mulf %127, %127 : vector<64x128xf32>
      %cst_41 = arith.constant -4.000000e+00 : f32
      %129 = vector.broadcast %cst_41 : f32 to vector<64x128xf32>
      %130 = arith.mulf %128, %129 : vector<64x128xf32>
      %131 = math.exp %130 : vector<64x128xf32>
      %132 = arith.addf %123, %131 : vector<64x128xf32>
      %133 = vector.extract_strided_slice %arg10 {offsets = [0, 7], sizes = [64, 1], strides = [1, 1]} : vector<64x128xf32> to vector<64x1xf32>
      %134 = vector.broadcast %133 : vector<64x1xf32> to vector<64x128xf32>
      %135 = vector.broadcast %54 : vector<1x128xf32> to vector<64x128xf32>
      %136 = arith.subf %134, %135 : vector<64x128xf32>
      %137 = arith.mulf %136, %136 : vector<64x128xf32>
      %cst_42 = arith.constant -4.000000e+00 : f32
      %138 = vector.broadcast %cst_42 : f32 to vector<64x128xf32>
      %139 = arith.mulf %137, %138 : vector<64x128xf32>
      %140 = math.exp %139 : vector<64x128xf32>
      %141 = arith.addf %132, %140 : vector<64x128xf32>
      %c8_i32_43 = arith.constant 8 : i32
      %142 = tpu.dynamic_rotate %arg10 by %c8_i32_43 dim 1 : vector<64x128xf32>, i32 -> vector<64x128xf32>
      scf.yield %141, %142 : vector<64x128xf32>, vector<64x128xf32>
    }
    %58 = arith.truncf %57#0 : vector<64x128xf32> to vector<64x128xbf16>
    %c0_24 = arith.constant 0 : index
    %c0_25 = arith.constant 0 : index
    %59 = vector.load %arg4[%c0_24, %c0_25] : memref<128x128xbf16, #tpu.memory_space<vmem>>, vector<128x128xbf16>
    %cst_26 = arith.constant dense<0.000000e+00> : vector<64x128xf32>
    %60 = tpu.matmul %58, %59, %cst_26 {dimension_numbers = #tpu.dot_dimension_numbers<[1], [0], [0], [1], [0, 0, 1, 1], [], []>} : vector<64x128xbf16>, vector<128x128xbf16>, vector<64x128xf32> -> vector<64x128xf32>
    %c0_27 = arith.constant 0 : index
    %c0_28 = arith.constant 0 : index
    %61 = vector.load %arg5[%c0_27, %c0_28] : memref<1x128xf32, #tpu.memory_space<vmem>>, vector<1x128xf32>
    %62 = vector.broadcast %61 : vector<1x128xf32> to vector<64x128xf32>
    %63 = arith.addf %60, %62 : vector<64x128xf32>
    %cst_29 = arith.constant 0.000000e+00 : f32
    %64 = vector.broadcast %cst_29 : f32 to vector<64x128xf32>
    %65 = arith.maximumf %63, %64 : vector<64x128xf32>
    %66 = arith.truncf %65 : vector<64x128xf32> to vector<64x128xbf16>
    %c0_30 = arith.constant 0 : index
    %c0_31 = arith.constant 0 : index
    %67 = vector.load %arg6[%c0_30, %c0_31] : memref<128x128xbf16, #tpu.memory_space<vmem>>, vector<128x128xbf16>
    %cst_32 = arith.constant dense<0.000000e+00> : vector<64x128xf32>
    %68 = tpu.matmul %66, %67, %cst_32 {dimension_numbers = #tpu.dot_dimension_numbers<[1], [0], [0], [1], [0, 0, 1, 1], [], []>} : vector<64x128xbf16>, vector<128x128xbf16>, vector<64x128xf32> -> vector<64x128xf32>
    %c0_33 = arith.constant 0 : index
    %c0_34 = arith.constant 0 : index
    %69 = vector.load %arg7[%c0_33, %c0_34] : memref<64x128xf32, #tpu.memory_space<vmem>>, vector<64x128xf32>
    tpu.vector_store %arg7[%c0_33, %c0_34], %68 {strides = array<i32>} : memref<64x128xf32, #tpu.memory_space<vmem>>, vector<64x128xf32>,
    return
  }
  func.func @transform_0(%arg0: i32) -> (i32, i32) {
    %c0_i32 = arith.constant 0 : i32
    %c0_i32_0 = arith.constant 0 : i32
    return %arg0, %c0_i32 : i32, i32
  }
  func.func @transform_1(%arg0: i32) -> (i32, i32) {
    %c0_i32 = arith.constant 0 : i32
    %c0_i32_0 = arith.constant 0 : i32
    %c0_i32_1 = arith.constant 0 : i32
    return %c0_i32, %c0_i32_0 : i32, i32
  }
  func.func @transform_2(%arg0: i32) -> (i32, i32) {
    %c0_i32 = arith.constant 0 : i32
    %c0_i32_0 = arith.constant 0 : i32
    %c0_i32_1 = arith.constant 0 : i32
    return %c0_i32, %c0_i32_0 : i32, i32
  }
  func.func @transform_3(%arg0: i32) -> (i32, i32) {
    %c0_i32 = arith.constant 0 : i32
    %c0_i32_0 = arith.constant 0 : i32
    %c0_i32_1 = arith.constant 0 : i32
    return %c0_i32, %c0_i32_0 : i32, i32
  }
  func.func @transform_4(%arg0: i32) -> (i32, i32) {
    %c0_i32 = arith.constant 0 : i32
    %c0_i32_0 = arith.constant 0 : i32
    %c0_i32_1 = arith.constant 0 : i32
    return %c0_i32, %c0_i32_0 : i32, i32
  }
  func.func @transform_5(%arg0: i32) -> (i32, i32) {
    %c0_i32 = arith.constant 0 : i32
    %c0_i32_0 = arith.constant 0 : i32
    %c0_i32_1 = arith.constant 0 : i32
    return %c0_i32, %c0_i32_0 : i32, i32
  }
  func.func @transform_6(%arg0: i32) -> (i32, i32) {
    %c0_i32 = arith.constant 0 : i32
    %c0_i32_0 = arith.constant 0 : i32
    return %arg0, %c0_i32 : i32, i32
  }
}

</mosaic_0001>

<llo_original>
// kernel: tpu_custom_call.1
$region0: #{tpu_custom_call.1}
  #allocation0 [shape = 'u32[]', space=smem, size = 0x4, offset = 0x4, fixed_abs, tag = 'smem constant byte address 0x4 - core index']
  #allocation1 [shape = 'u32[144,128]{1,0:T(1,128)}', space=vmem, size = 0x12000, scoped, tag = 'internal scratch']
  %s0 = inlined_call_operand.vmem [shape: f32[64,3], index: 0, kind: input, shape index: {}]
  %s1 = inlined_call_operand.vmem [shape: f32[3,128], index: 1, kind: input, shape index: {}]
  %s2 = inlined_call_operand.vmem [shape: f32[1,128], index: 2, kind: input, shape index: {}]
  %s3 = inlined_call_operand.vmem [shape: bf16[128,128], index: 3, kind: input, shape index: {}]
  %s4 = inlined_call_operand.vmem [shape: f32[1,128], index: 4, kind: input, shape index: {}]
  %s5 = inlined_call_operand.hbm [shape: bf16[128,128], index: 5, kind: input, shape index: {}]
  %s6 = inlined_call_operand.hbm [shape: f32[64,128], index: 6, kind: output, shape index: {}]
  %s7 = sld [smem:[#allocation0]]
  $region45: #{tpu_custom_call.1} parent=0
    _
  %s9 = ssub.s32 1, %s7
  %s10 = scalar_select 0, %s9, %s7
  $region1: #{tpu_custom_call.1} parent=0
    #allocation2 [shape = 'u8[32768]{0}', space=vmem, size = 0x8000, scoped, tag = 'input window, operand 5, single buffered']
    #allocation3 [shape = 's32[1]{0}', space=sflag, size = 0x4, scoped, tag = 'scoped memory for tpu_custom_call.1']
    #allocation4 [shape = 's32[1]{0}', space=sflag, size = 0x4, scoped, tag = 'scoped memory for tpu_custom_call.1']
    #allocation5 [shape = 'u8[32768]{0}', space=vmem, size = 0x8000, scoped, tag = 'output window, operand 0, single buffered']
    %11 = vsyncpa [#allocation3], 0
    %12 = vsyncpa [#allocation4], 0
    // Predicated region
    $region2: #{tpu_custom_call.1} parent=1 // pred_check
      _
    $region3: #{tpu_custom_call.1} parent=1 // pred_check_branch
      %14 = sbr.rel (0) target = $region5
    $region4: #{tpu_custom_call.1} parent=1 // pred_region
      _
    $region5: #{tpu_custom_call.1} parent=1 // pred_fallthru
      _
    // Predicated region
    $region6: #{tpu_custom_call.1} parent=1 // pred_check
      _
    $region7: #{tpu_custom_call.1} parent=1 // pred_check_branch
      %16 = sbr.rel (0) target = $region9
    $region8: #{tpu_custom_call.1} parent=1 // pred_region
      _
    $region9: #{tpu_custom_call.1} parent=1 // pred_fallthru
      _
    // Predicated region
    $region10: #{tpu_custom_call.1} parent=1 // pred_check
      _
    $region11: #{tpu_custom_call.1} parent=1 // pred_check_branch
      %18 = sbr.rel (0) target = $region13
    $region12: #{tpu_custom_call.1} parent=1 // pred_region
      _
    $region13: #{tpu_custom_call.1} parent=1 // pred_fallthru
      _
    // Predicated region
    $region14: #{tpu_custom_call.1} parent=1 // pred_check
      _
    $region15: #{tpu_custom_call.1} parent=1 // pred_check_branch
      %20 = sbr.rel (0) target = $region17
    $region16: #{tpu_custom_call.1} parent=1 // pred_region
      _
    $region17: #{tpu_custom_call.1} parent=1 // pred_fallthru
      _
    // Predicated region
    $region18: #{tpu_custom_call.1} parent=1 // pred_check
      _
    $region19: #{tpu_custom_call.1} parent=1 // pred_check_branch
      %22 = sbr.rel (0) target = $region21
    $region20: #{tpu_custom_call.1} parent=1 // pred_region
      _
    $region21: #{tpu_custom_call.1} parent=1 // pred_fallthru
      _
    // Predicated region
    $region22: #{tpu_custom_call.1} parent=1 // pred_check
      _
    $region23: #{tpu_custom_call.1} parent=1 // pred_check_branch
      %24 = sbr.rel (0) target = $region25
    $region24: #{tpu_custom_call.1} parent=1 // pred_region
      %s26 = ssub.s32 1024, 1024
      %27 = vsyncadd [#allocation3], %s26
      %s28 = sshll.u32 [#allocation2], 4
      %s29 = int_to_ptr.vmem [resolvable:$true] %s28
      %34 = dma.hbm_to_vmem [thread:$0]  %s5, 1024, %s29, [#allocation3], 64, 64, 4
    $region25: #{tpu_custom_call.1} parent=1 // pred_fallthru
      _
    // Predicated region
    $region26: #{tpu_custom_call.1} parent=1 // pred_check
      _
    $region27: #{tpu_custom_call.1} parent=1 // pred_check_branch
      %36 = sbr.rel (0) target = $region29
    $region28: #{tpu_custom_call.1} parent=1 // pred_region
      %37 = dma.done [#allocation3], 1024
    $region29: #{tpu_custom_call.1} parent=1 // pred_fallthru
      _
    %v39 = vld [vmem:[%s0] sm:$0xff]
    %v40 = vld [vmem:[%s0 + $0x8] sm:$0xff]
    %v41 = vld [vmem:[%s0 + $0x10] sm:$0xff]
    %v42 = vld [vmem:[%s0 + $0x18] sm:$0xff]
    %v43 = vld [vmem:[%s0 + $0x20] sm:$0xff]
    %v44 = vld [vmem:[%s0 + $0x28] sm:$0xff]
    %v45 = vld [vmem:[%s0 + $0x30] sm:$0xff]
    %v46 = vld [vmem:[%s0 + $0x38] sm:$0xff]
    %v47 = vld [vmem:[%s1] sm:$0x1]
    %v48 = vld [vmem:[%s1 + $0x1] sm:$0x1]
    %v49 = vld [vmem:[%s1 + $0x2] sm:$0x1]
    %51 = vset.pattern.permute.xlu0 0
    %52 = vperm.xlu0 %51, %v39
    %v53 = vpop.permute.xlu0 %52
    %56 = vset.pattern.permute.xlu0 0
    %57 = vperm.xlu0 %56, %v40
    %v58 = vpop.permute.xlu0 %57
    %61 = vset.pattern.permute.xlu0 0
    %62 = vperm.xlu0 %61, %v41
    %v63 = vpop.permute.xlu0 %62
    %66 = vset.pattern.permute.xlu0 0
    %67 = vperm.xlu0 %66, %v42
    %v68 = vpop.permute.xlu0 %67
    %71 = vset.pattern.permute.xlu0 0
    %72 = vperm.xlu0 %71, %v43
    %v73 = vpop.permute.xlu0 %72
    %76 = vset.pattern.permute.xlu0 0
    %77 = vperm.xlu0 %76, %v44
    %v78 = vpop.permute.xlu0 %77
    %81 = vset.pattern.permute.xlu0 0
    %82 = vperm.xlu0 %81, %v45
    %v83 = vpop.permute.xlu0 %82
    %86 = vset.pattern.permute.xlu0 0
    %87 = vperm.xlu0 %86, %v46
    %v88 = vpop.permute.xlu0 %87
    %v90 = vlaneseq
    %v91 = vshrl.u32 %v90, 7
    %v92 = vsub.s32 0, %v91
    %v93 = vrot.slane %v47, %v92
    %v94 = vsub.f32 %v53, %v93
    %v95 = vsub.f32 %v58, %v93
    %v96 = vsub.f32 %v63, %v93
    %v97 = vsub.f32 %v68, %v93
    %v98 = vsub.f32 %v73, %v93
    %v99 = vsub.f32 %v78, %v93
    %v100 = vsub.f32 %v83, %v93
    %v101 = vsub.f32 %v88, %v93
    %102 = vset.pattern.permute.xlu0 1
    %103 = vperm.xlu0 %102, %v39
    %v104 = vpop.permute.xlu0 %103
    %106 = vset.pattern.permute.xlu0 1
    %107 = vperm.xlu0 %106, %v40
    %v108 = vpop.permute.xlu0 %107
    %110 = vset.pattern.permute.xlu0 1
    %111 = vperm.xlu0 %110, %v41
    %v112 = vpop.permute.xlu0 %111
    %114 = vset.pattern.permute.xlu0 1
    %115 = vperm.xlu0 %114, %v42
    %v116 = vpop.permute.xlu0 %115
    %118 = vset.pattern.permute.xlu0 1
    %119 = vperm.xlu0 %118, %v43
    %v120 = vpop.permute.xlu0 %119
    %122 = vset.pattern.permute.xlu0 1
    %123 = vperm.xlu0 %122, %v44
    %v124 = vpop.permute.xlu0 %123
    %126 = vset.pattern.permute.xlu0 1
    %127 = vperm.xlu0 %126, %v45
    %v128 = vpop.permute.xlu0 %127
    %130 = vset.pattern.permute.xlu0 1
    %131 = vperm.xlu0 %130, %v46
    %v132 = vpop.permute.xlu0 %131
    %v134 = vlaneseq
    %v135 = vshrl.u32 %v134, 7
    %v136 = vsub.s32 0, %v135
    %v137 = vrot.slane %v48, %v136
    %v138 = vsub.f32 %v104, %v137
    %v139 = vsub.f32 %v108, %v137
    %v140 = vsub.f32 %v112, %v137
    %v141 = vsub.f32 %v116, %v137
    %v142 = vsub.f32 %v120, %v137
    %v143 = vsub.f32 %v124, %v137
    %v144 = vsub.f32 %v128, %v137
    %v145 = vsub.f32 %v132, %v137
    %146 = vset.pattern.permute.xlu0 2
    %147 = vperm.xlu0 %146, %v39
    %v148 = vpop.permute.xlu0 %147
    %150 = vset.pattern.permute.xlu0 2
    %151 = vperm.xlu0 %150, %v40
    %v152 = vpop.permute.xlu0 %151
    %154 = vset.pattern.permute.xlu0 2
    %155 = vperm.xlu0 %154, %v41
    %v156 = vpop.permute.xlu0 %155
    %158 = vset.pattern.permute.xlu0 2
    %159 = vperm.xlu0 %158, %v42
    %v160 = vpop.permute.xlu0 %159
    %162 = vset.pattern.permute.xlu0 2
    %163 = vperm.xlu0 %162, %v43
    %v164 = vpop.permute.xlu0 %163
    %166 = vset.pattern.permute.xlu0 2
    %167 = vperm.xlu0 %166, %v44
    %v168 = vpop.permute.xlu0 %167
    %170 = vset.pattern.permute.xlu0 2
    %171 = vperm.xlu0 %170, %v45
    %v172 = vpop.permute.xlu0 %171
    %174 = vset.pattern.permute.xlu0 2
    %175 = vperm.xlu0 %174, %v46
    %v176 = vpop.permute.xlu0 %175
    %v178 = vlaneseq
    %v179 = vshrl.u32 %v178, 7
    %v180 = vsub.s32 0, %v179
    %v181 = vrot.slane %v49, %v180
    %v182 = vsub.f32 %v148, %v181
    %v183 = vsub.f32 %v152, %v181
    %v184 = vsub.f32 %v156, %v181
    %v185 = vsub.f32 %v160, %v181
    %v186 = vsub.f32 %v164, %v181
    %v187 = vsub.f32 %v168, %v181
    %v188 = vsub.f32 %v172, %v181
    %v189 = vsub.f32 %v176, %v181
    %v190 = vmul.f32 %v94, 0.1
    %v191 = vmul.f32 %v95, 0.1
    %v192 = vmul.f32 %v96, 0.1
    %v193 = vmul.f32 %v97, 0.1
    %v194 = vmul.f32 %v98, 0.1
    %v195 = vmul.f32 %v99, 0.1
    %v196 = vmul.f32 %v100, 0.1
    %v197 = vmul.f32 %v101, 0.1
    %v198 = vadd.f32 %v190, 0.5
    %v199 = vadd.f32 %v191, 0.5
    %v200 = vadd.f32 %v192, 0.5
    %v201 = vadd.f32 %v193, 0.5
    %v202 = vadd.f32 %v194, 0.5
    %v203 = vadd.f32 %v195, 0.5
    %v204 = vadd.f32 %v196, 0.5
    %v205 = vadd.f32 %v197, 0.5
    %v206 = vfloor.f32 %v198
    %v207 = vfloor.f32 %v199
    %v208 = vfloor.f32 %v200
    %v209 = vfloor.f32 %v201
    %v210 = vfloor.f32 %v202
    %v211 = vfloor.f32 %v203
    %v212 = vfloor.f32 %v204
    %v213 = vfloor.f32 %v205
    %v214 = vmul.f32 %v206, 10.0
    %v215 = vmul.f32 %v207, 10.0
    %v216 = vmul.f32 %v208, 10.0
    %v217 = vmul.f32 %v209, 10.0
    %v218 = vmul.f32 %v210, 10.0
    %v219 = vmul.f32 %v211, 10.0
    %v220 = vmul.f32 %v212, 10.0
    %v221 = vmul.f32 %v213, 10.0
    %v222 = vsub.f32 %v94, %v214
    %v223 = vsub.f32 %v95, %v215
    %v224 = vsub.f32 %v96, %v216
    %v225 = vsub.f32 %v97, %v217
    %v226 = vsub.f32 %v98, %v218
    %v227 = vsub.f32 %v99, %v219
    %v228 = vsub.f32 %v100, %v220
    %v229 = vsub.f32 %v101, %v221
    %v230 = vmul.f32 %v138, 0.1
    %v231 = vmul.f32 %v139, 0.1
    %v232 = vmul.f32 %v140, 0.1
    %v233 = vmul.f32 %v141, 0.1
    %v234 = vmul.f32 %v142, 0.1
    %v235 = vmul.f32 %v143, 0.1
    %v236 = vmul.f32 %v144, 0.1
    %v237 = vmul.f32 %v145, 0.1
    %v238 = vadd.f32 %v230, 0.5
    %v239 = vadd.f32 %v231, 0.5
    %v240 = vadd.f32 %v232, 0.5
    %v241 = vadd.f32 %v233, 0.5
    %v242 = vadd.f32 %v234, 0.5
    %v243 = vadd.f32 %v235, 0.5
    %v244 = vadd.f32 %v236, 0.5
    %v245 = vadd.f32 %v237, 0.5
    %v246 = vfloor.f32 %v238
    %v247 = vfloor.f32 %v239
    %v248 = vfloor.f32 %v240
    %v249 = vfloor.f32 %v241
    %v250 = vfloor.f32 %v242
    %v251 = vfloor.f32 %v243
    %v252 = vfloor.f32 %v244
    %v253 = vfloor.f32 %v245
    %v254 = vmul.f32 %v246, 10.0
    %v255 = vmul.f32 %v247, 10.0
    %v256 = vmul.f32 %v248, 10.0
    %v257 = vmul.f32 %v249, 10.0
    %v258 = vmul.f32 %v250, 10.0
    %v259 = vmul.f32 %v251, 10.0
    %v260 = vmul.f32 %v252, 10.0
    %v261 = vmul.f32 %v253, 10.0
    %v262 = vsub.f32 %v138, %v254
    %v263 = vsub.f32 %v139, %v255
    %v264 = vsub.f32 %v140, %v256
    %v265 = vsub.f32 %v141, %v257
    %v266 = vsub.f32 %v142, %v258
    %v267 = vsub.f32 %v143, %v259
    %v268 = vsub.f32 %v144, %v260
    %v269 = vsub.f32 %v145, %v261
    %v270 = vmul.f32 %v182, 0.1
    %v271 = vmul.f32 %v183, 0.1
    %v272 = vmul.f32 %v184, 0.1
    %v273 = vmul.f32 %v185, 0.1
    %v274 = vmul.f32 %v186, 0.1
    %v275 = vmul.f32 %v187, 0.1
    %v276 = vmul.f32 %v188, 0.1
    %v277 = vmul.f32 %v189, 0.1
    %v278 = vadd.f32 %v270, 0.5
    %v279 = vadd.f32 %v271, 0.5
    %v280 = vadd.f32 %v272, 0.5
    %v281 = vadd.f32 %v273, 0.5
    %v282 = vadd.f32 %v274, 0.5
    %v283 = vadd.f32 %v275, 0.5
    %v284 = vadd.f32 %v276, 0.5
    %v285 = vadd.f32 %v277, 0.5
    %v286 = vfloor.f32 %v278
    %v287 = vfloor.f32 %v279
    %v288 = vfloor.f32 %v280
    %v289 = vfloor.f32 %v281
    %v290 = vfloor.f32 %v282
    %v291 = vfloor.f32 %v283
    %v292 = vfloor.f32 %v284
    %v293 = vfloor.f32 %v285
    %v294 = vmul.f32 %v286, 10.0
    %v295 = vmul.f32 %v287, 10.0
    %v296 = vmul.f32 %v288, 10.0
    %v297 = vmul.f32 %v289, 10.0
    %v298 = vmul.f32 %v290, 10.0
    %v299 = vmul.f32 %v291, 10.0
    %v300 = vmul.f32 %v292, 10.0
    %v301 = vmul.f32 %v293, 10.0
    %v302 = vsub.f32 %v182, %v294
    %v303 = vsub.f32 %v183, %v295
    %v304 = vsub.f32 %v184, %v296
    %v305 = vsub.f32 %v185, %v297
    %v306 = vsub.f32 %v186, %v298
    %v307 = vsub.f32 %v187, %v299
    %v308 = vsub.f32 %v188, %v300
    %v309 = vsub.f32 %v189, %v301
    %v310 = vmul.f32 %v222, %v222
    %v311 = vmul.f32 %v223, %v223
    %v312 = vmul.f32 %v224, %v224
    %v313 = vmul.f32 %v225, %v225
    %v314 = vmul.f32 %v226, %v226
    %v315 = vmul.f32 %v227, %v227
    %v316 = vmul.f32 %v228, %v228
    %v317 = vmul.f32 %v229, %v229
    %v318 = vmul.f32 %v262, %v262
    %v319 = vmul.f32 %v263, %v263
    %v320 = vmul.f32 %v264, %v264
    %v321 = vmul.f32 %v265, %v265
    %v322 = vmul.f32 %v266, %v266
    %v323 = vmul.f32 %v267, %v267
    %v324 = vmul.f32 %v268, %v268
    %v325 = vmul.f32 %v269, %v269
    %v326 = vadd.f32 %v310, %v318
    %v327 = vadd.f32 %v311, %v319
    %v328 = vadd.f32 %v312, %v320
    %v329 = vadd.f32 %v313, %v321
    %v330 = vadd.f32 %v314, %v322
    %v331 = vadd.f32 %v315, %v323
    %v332 = vadd.f32 %v316, %v324
    %v333 = vadd.f32 %v317, %v325
    %v334 = vmul.f32 %v302, %v302
    %v335 = vmul.f32 %v303, %v303
    %v336 = vmul.f32 %v304, %v304
    %v337 = vmul.f32 %v305, %v305
    %v338 = vmul.f32 %v306, %v306
    %v339 = vmul.f32 %v307, %v307
    %v340 = vmul.f32 %v308, %v308
    %v341 = vmul.f32 %v309, %v309
    %v342 = vadd.f32 %v326, %v334
    %v343 = vadd.f32 %v327, %v335
    %v344 = vadd.f32 %v328, %v336
    %v345 = vadd.f32 %v329, %v337
    %v346 = vadd.f32 %v330, %v338
    %v347 = vadd.f32 %v331, %v339
    %v348 = vadd.f32 %v332, %v340
    %v349 = vadd.f32 %v333, %v341
    %v350 = vadd.f32 %v342, 1e-12
    %v351 = vadd.f32 %v343, 1e-12
    %v352 = vadd.f32 %v344, 1e-12
    %v353 = vadd.f32 %v345, 1e-12
    %v354 = vadd.f32 %v346, 1e-12
    %v355 = vadd.f32 %v347, 1e-12
    %v356 = vadd.f32 %v348, 1e-12
    %v357 = vadd.f32 %v349, 1e-12
    %v358 = vrsqrt.pop %v350
    %v359 = vmul.f32 %v350, %v358
    %vm360 = vcmp.eq.f32.partialorder %v350, inf
    %v361 = vsel %vm360, %v350, %v359
    %vm362 = vcmp.eq.f32.partialorder %v350, 0.0
    %v363 = vand.u32 %v350, 2147483648
    %v364 = vsel %vm362, %v363, %v361
    %v365 = vrsqrt.pop %v351
    %v366 = vmul.f32 %v351, %v365
    %vm367 = vcmp.eq.f32.partialorder %v351, inf
    %v368 = vsel %vm367, %v351, %v366
    %vm369 = vcmp.eq.f32.partialorder %v351, 0.0
    %v370 = vand.u32 %v351, 2147483648
    %v371 = vsel %vm369, %v370, %v368
    %v372 = vrsqrt.pop %v352
    %v373 = vmul.f32 %v352, %v372
    %vm374 = vcmp.eq.f32.partialorder %v352, inf
    %v375 = vsel %vm374, %v352, %v373
    %vm376 = vcmp.eq.f32.partialorder %v352, 0.0
    %v377 = vand.u32 %v352, 2147483648
    %v378 = vsel %vm376, %v377, %v375
    %v379 = vrsqrt.pop %v353
    %v380 = vmul.f32 %v353, %v379
    %vm381 = vcmp.eq.f32.partialorder %v353, inf
    %v382 = vsel %vm381, %v353, %v380
    %vm383 = vcmp.eq.f32.partialorder %v353, 0.0
    %v384 = vand.u32 %v353, 2147483648
    %v385 = vsel %vm383, %v384, %v382
    %v386 = vrsqrt.pop %v354
    %v387 = vmul.f32 %v354, %v386
    %vm388 = vcmp.eq.f32.partialorder %v354, inf
    %v389 = vsel %vm388, %v354, %v387
    %vm390 = vcmp.eq.f32.partialorder %v354, 0.0
    %v391 = vand.u32 %v354, 2147483648
    %v392 = vsel %vm390, %v391, %v389
    %v393 = vrsqrt.pop %v355
    %v394 = vmul.f32 %v355, %v393
    %vm395 = vcmp.eq.f32.partialorder %v355, inf
    %v396 = vsel %vm395, %v355, %v394
    %vm397 = vcmp.eq.f32.partialorder %v355, 0.0
    %v398 = vand.u32 %v355, 2147483648
    %v399 = vsel %vm397, %v398, %v396
    %v400 = vrsqrt.pop %v356
    %v401 = vmul.f32 %v356, %v400
    %vm402 = vcmp.eq.f32.partialorder %v356, inf
    %v403 = vsel %vm402, %v356, %v401
    %vm404 = vcmp.eq.f32.partialorder %v356, 0.0
    %v405 = vand.u32 %v356, 2147483648
    %v406 = vsel %vm404, %v405, %v403
    %v407 = vrsqrt.pop %v357
    %v408 = vmul.f32 %v357, %v407
    %vm409 = vcmp.eq.f32.partialorder %v357, inf
    %v410 = vsel %vm409, %v357, %v408
    %vm411 = vcmp.eq.f32.partialorder %v357, 0.0
    %v412 = vand.u32 %v357, 2147483648
    %v413 = vsel %vm411, %v412, %v410
    %vm414 = vcmp.gt.f32.partialorder %v364, 1.0
    %vm415 = vcmp.gt.f32.partialorder %v371, 1.0
    %vm416 = vcmp.gt.f32.partialorder %v378, 1.0
    %vm417 = vcmp.gt.f32.partialorder %v385, 1.0
    %vm418 = vcmp.gt.f32.partialorder %v392, 1.0
    %vm419 = vcmp.gt.f32.partialorder %v399, 1.0
    %vm420 = vcmp.gt.f32.partialorder %v406, 1.0
    %vm421 = vcmp.gt.f32.partialorder %v413, 1.0
    %vm422 = vcmp.lt.f32.partialorder %v364, 3.0
    %vm423 = vcmp.lt.f32.partialorder %v371, 3.0
    %vm424 = vcmp.lt.f32.partialorder %v378, 3.0
    %vm425 = vcmp.lt.f32.partialorder %v385, 3.0
    %vm426 = vcmp.lt.f32.partialorder %v392, 3.0
    %vm427 = vcmp.lt.f32.partialorder %v399, 3.0
    %vm428 = vcmp.lt.f32.partialorder %v406, 3.0
    %vm429 = vcmp.lt.f32.partialorder %v413, 3.0
    %vm430 = vmand %vm414, %vm422
    %vm431 = vmand %vm415, %vm423
    %vm432 = vmand %vm416, %vm424
    %vm433 = vmand %vm417, %vm425
    %vm434 = vmand %vm418, %vm426
    %vm435 = vmand %vm419, %vm427
    %vm436 = vmand %vm420, %vm428
    %vm437 = vmand %vm421, %vm429
    %v438 = vsel %vm430, %v364, 1000.0
    %v439 = vsel %vm431, %v371, 1000.0
    %v440 = vsel %vm432, %v378, 1000.0
    %v441 = vsel %vm433, %v385, 1000.0
    %v442 = vsel %vm434, %v392, 1000.0
    %v443 = vsel %vm435, %v399, 1000.0
    %v444 = vsel %vm436, %v406, 1000.0
    %v445 = vsel %vm437, %v413, 1000.0
    %v446 = vld [vmem:[%s2] sm:$0x1]
    loop: start=0, step=1, limit=8
    $region30: #{tpu_custom_call.1} parent=1 // loop_pre_header
      _
    $region31: #{tpu_custom_call.1} parent=1 // loop_header
      %s448 = sphi 0, %s452
      %p449 = scmp.ge.s32.totalorder %s448, 8
      %v453 = vphi 0.0, %v1115
      %v454 = vphi 0.0, %v1116
      %v455 = vphi 0.0, %v1117
      %v456 = vphi 0.0, %v1118
      %v457 = vphi 0.0, %v1119
      %v458 = vphi 0.0, %v1120
      %v459 = vphi 0.0, %v1121
      %v460 = vphi 0.0, %v1122
      %v461 = vphi %v438, %v1124
      %v462 = vphi %v439, %v1126
      %v463 = vphi %v440, %v1128
      %v464 = vphi %v441, %v1130
      %v465 = vphi %v442, %v1132
      %v466 = vphi %v443, %v1134
      %v467 = vphi %v444, %v1136
      %v468 = vphi %v445, %v1138
    $region32: #{tpu_custom_call.1} parent=1 // loop_header_branch
      %451 = sbr.rel (%p449) target = $region36
    $region33: #{tpu_custom_call.1} parent=1 // loop_body
      %470 = vset.pattern.permute.xlu0 0
      %471 = vperm.xlu0 %470, %v461
      %v472 = vpop.permute.xlu0 %471
      %475 = vset.pattern.permute.xlu0 0
      %476 = vperm.xlu0 %475, %v462
      %v477 = vpop.permute.xlu0 %476
      %480 = vset.pattern.permute.xlu0 0
      %481 = vperm.xlu0 %480, %v463
      %v482 = vpop.permute.xlu0 %481
      %485 = vset.pattern.permute.xlu0 0
      %486 = vperm.xlu0 %485, %v464
      %v487 = vpop.permute.xlu0 %486
      %490 = vset.pattern.permute.xlu0 0
      %491 = vperm.xlu0 %490, %v465
      %v492 = vpop.permute.xlu0 %491
      %495 = vset.pattern.permute.xlu0 0
      %496 = vperm.xlu0 %495, %v466
      %v497 = vpop.permute.xlu0 %496
      %500 = vset.pattern.permute.xlu0 0
      %501 = vperm.xlu0 %500, %v467
      %v502 = vpop.permute.xlu0 %501
      %505 = vset.pattern.permute.xlu0 0
      %506 = vperm.xlu0 %505, %v468
      %v507 = vpop.permute.xlu0 %506
      %v510 = vlaneseq
      %v511 = vshrl.u32 %v510, 7
      %v512 = vsub.s32 0, %v511
      %v513 = vrot.slane %v446, %v512
      %v515 = vsub.f32 %v472, %v513
      %v516 = vsub.f32 %v477, %v513
      %v517 = vsub.f32 %v482, %v513
      %v518 = vsub.f32 %v487, %v513
      %v519 = vsub.f32 %v492, %v513
      %v520 = vsub.f32 %v497, %v513
      %v521 = vsub.f32 %v502, %v513
      %v522 = vsub.f32 %v507, %v513
      %v523 = vmul.f32 %v515, %v515
      %v524 = vmul.f32 %v516, %v516
      %v525 = vmul.f32 %v517, %v517
      %v526 = vmul.f32 %v518, %v518
      %v527 = vmul.f32 %v519, %v519
      %v528 = vmul.f32 %v520, %v520
      %v529 = vmul.f32 %v521, %v521
      %v530 = vmul.f32 %v522, %v522
      %v531 = vmul.f32 %v523, -4.0
      %v532 = vmul.f32 %v524, -4.0
      %v533 = vmul.f32 %v525, -4.0
      %v534 = vmul.f32 %v526, -4.0
      %v535 = vmul.f32 %v527, -4.0
      %v536 = vmul.f32 %v528, -4.0
      %v537 = vmul.f32 %v529, -4.0
      %v538 = vmul.f32 %v530, -4.0
      %v539 = vmul.f32 %v531, 1.442695
      %v540 = vpow.pop %v539
      %v541 = vmul.f32 %v532, 1.442695
      %v542 = vpow.pop %v541
      %v543 = vmul.f32 %v533, 1.442695
      %v544 = vpow.pop %v543
      %v545 = vmul.f32 %v534, 1.442695
      %v546 = vpow.pop %v545
      %v547 = vmul.f32 %v535, 1.442695
      %v548 = vpow.pop %v547
      %v549 = vmul.f32 %v536, 1.442695
      %v550 = vpow.pop %v549
      %v551 = vmul.f32 %v537, 1.442695
      %v552 = vpow.pop %v551
      %v553 = vmul.f32 %v538, 1.442695
      %v554 = vpow.pop %v553
      %v555 = vadd.f32 %v453, %v540
      %v556 = vadd.f32 %v454, %v542
      %v557 = vadd.f32 %v455, %v544
      %v558 = vadd.f32 %v456, %v546
      %v559 = vadd.f32 %v457, %v548
      %v560 = vadd.f32 %v458, %v550
      %v561 = vadd.f32 %v459, %v552
      %v562 = vadd.f32 %v460, %v554
      %563 = vset.pattern.permute.xlu0 1
      %564 = vperm.xlu0 %563, %v461
      %v565 = vpop.permute.xlu0 %564
      %567 = vset.pattern.permute.xlu0 1
      %568 = vperm.xlu0 %567, %v462
      %v569 = vpop.permute.xlu0 %568
      %571 = vset.pattern.permute.xlu0 1
      %572 = vperm.xlu0 %571, %v463
      %v573 = vpop.permute.xlu0 %572
      %575 = vset.pattern.permute.xlu0 1
      %576 = vperm.xlu0 %575, %v464
      %v577 = vpop.permute.xlu0 %576
      %579 = vset.pattern.permute.xlu0 1
      %580 = vperm.xlu0 %579, %v465
      %v581 = vpop.permute.xlu0 %580
      %583 = vset.pattern.permute.xlu0 1
      %584 = vperm.xlu0 %583, %v466
      %v585 = vpop.permute.xlu0 %584
      %587 = vset.pattern.permute.xlu0 1
      %588 = vperm.xlu0 %587, %v467
      %v589 = vpop.permute.xlu0 %588
      %591 = vset.pattern.permute.xlu0 1
      %592 = vperm.xlu0 %591, %v468
      %v593 = vpop.permute.xlu0 %592
      %v595 = vsub.f32 %v565, %v513
      %v596 = vsub.f32 %v569, %v513
      %v597 = vsub.f32 %v573, %v513
      %v598 = vsub.f32 %v577, %v513
      %v599 = vsub.f32 %v581, %v513
      %v600 = vsub.f32 %v585, %v513
      %v601 = vsub.f32 %v589, %v513
      %v602 = vsub.f32 %v593, %v513
      %v603 = vmul.f32 %v595, %v595
      %v604 = vmul.f32 %v596, %v596
      %v605 = vmul.f32 %v597, %v597
      %v606 = vmul.f32 %v598, %v598
      %v607 = vmul.f32 %v599, %v599
      %v608 = vmul.f32 %v600, %v600
      %v609 = vmul.f32 %v601, %v601
      %v610 = vmul.f32 %v602, %v602
      %v611 = vmul.f32 %v603, -4.0
      %v612 = vmul.f32 %v604, -4.0
      %v613 = vmul.f32 %v605, -4.0
      %v614 = vmul.f32 %v606, -4.0
      %v615 = vmul.f32 %v607, -4.0
      %v616 = vmul.f32 %v608, -4.0
      %v617 = vmul.f32 %v609, -4.0
      %v618 = vmul.f32 %v610, -4.0
      %v619 = vmul.f32 %v611, 1.442695
      %v620 = vpow.pop %v619
      %v621 = vmul.f32 %v612, 1.442695
      %v622 = vpow.pop %v621
      %v623 = vmul.f32 %v613, 1.442695
      %v624 = vpow.pop %v623
      %v625 = vmul.f32 %v614, 1.442695
      %v626 = vpow.pop %v625
      %v627 = vmul.f32 %v615, 1.442695
      %v628 = vpow.pop %v627
      %v629 = vmul.f32 %v616, 1.442695
      %v630 = vpow.pop %v629
      %v631 = vmul.f32 %v617, 1.442695
      %v632 = vpow.pop %v631
      %v633 = vmul.f32 %v618, 1.442695
      %v634 = vpow.pop %v633
      %v635 = vadd.f32 %v555, %v620
      %v636 = vadd.f32 %v556, %v622
      %v637 = vadd.f32 %v557, %v624
      %v638 = vadd.f32 %v558, %v626
      %v639 = vadd.f32 %v559, %v628
      %v640 = vadd.f32 %v560, %v630
      %v641 = vadd.f32 %v561, %v632
      %v642 = vadd.f32 %v562, %v634
      %643 = vset.pattern.permute.xlu0 2
      %644 = vperm.xlu0 %643, %v461
      %v645 = vpop.permute.xlu0 %644
      %647 = vset.pattern.permute.xlu0 2
      %648 = vperm.xlu0 %647, %v462
      %v649 = vpop.permute.xlu0 %648
      %651 = vset.pattern.permute.xlu0 2
      %652 = vperm.xlu0 %651, %v463
      %v653 = vpop.permute.xlu0 %652
      %655 = vset.pattern.permute.xlu0 2
      %656 = vperm.xlu0 %655, %v464
      %v657 = vpop.permute.xlu0 %656
      %659 = vset.pattern.permute.xlu0 2
      %660 = vperm.xlu0 %659, %v465
      %v661 = vpop.permute.xlu0 %660
      %663 = vset.pattern.permute.xlu0 2
      %664 = vperm.xlu0 %663, %v466
      %v665 = vpop.permute.xlu0 %664
      %667 = vset.pattern.permute.xlu0 2
      %668 = vperm.xlu0 %667, %v467
      %v669 = vpop.permute.xlu0 %668
      %671 = vset.pattern.permute.xlu0 2
      %672 = vperm.xlu0 %671, %v468
      %v673 = vpop.permute.xlu0 %672
      %v675 = vsub.f32 %v645, %v513
      %v676 = vsub.f32 %v649, %v513
      %v677 = vsub.f32 %v653, %v513
      %v678 = vsub.f32 %v657, %v513
      %v679 = vsub.f32 %v661, %v513
      %v680 = vsub.f32 %v665, %v513
      %v681 = vsub.f32 %v669, %v513
      %v682 = vsub.f32 %v673, %v513
      %v683 = vmul.f32 %v675, %v675
      %v684 = vmul.f32 %v676, %v676
      %v685 = vmul.f32 %v677, %v677
      %v686 = vmul.f32 %v678, %v678
      %v687 = vmul.f32 %v679, %v679
      %v688 = vmul.f32 %v680, %v680
      %v689 = vmul.f32 %v681, %v681
      %v690 = vmul.f32 %v682, %v682
      %v691 = vmul.f32 %v683, -4.0
      %v692 = vmul.f32 %v684, -4.0
      %v693 = vmul.f32 %v685, -4.0
      %v694 = vmul.f32 %v686, -4.0
      %v695 = vmul.f32 %v687, -4.0
      %v696 = vmul.f32 %v688, -4.0
      %v697 = vmul.f32 %v689, -4.0
      %v698 = vmul.f32 %v690, -4.0
      %v699 = vmul.f32 %v691, 1.442695
      %v700 = vpow.pop %v699
      %v701 = vmul.f32 %v692, 1.442695
      %v702 = vpow.pop %v701
      %v703 = vmul.f32 %v693, 1.442695
      %v704 = vpow.pop %v703
      %v705 = vmul.f32 %v694, 1.442695
      %v706 = vpow.pop %v705
      %v707 = vmul.f32 %v695, 1.442695
      %v708 = vpow.pop %v707
      %v709 = vmul.f32 %v696, 1.442695
      %v710 = vpow.pop %v709
      %v711 = vmul.f32 %v697, 1.442695
      %v712 = vpow.pop %v711
      %v713 = vmul.f32 %v698, 1.442695
      %v714 = vpow.pop %v713
      %v715 = vadd.f32 %v635, %v700
      %v716 = vadd.f32 %v636, %v702
      %v717 = vadd.f32 %v637, %v704
      %v718 = vadd.f32 %v638, %v706
      %v719 = vadd.f32 %v639, %v708
      %v720 = vadd.f32 %v640, %v710
      %v721 = vadd.f32 %v641, %v712
      %v722 = vadd.f32 %v642, %v714
      %723 = vset.pattern.permute.xlu0 3
      %724 = vperm.xlu0 %723, %v461
      %v725 = vpop.permute.xlu0 %724
      %727 = vset.pattern.permute.xlu0 3
      %728 = vperm.xlu0 %727, %v462
      %v729 = vpop.permute.xlu0 %728
      %731 = vset.pattern.permute.xlu0 3
      %732 = vperm.xlu0 %731, %v463
      %v733 = vpop.permute.xlu0 %732
      %735 = vset.pattern.permute.xlu0 3
      %736 = vperm.xlu0 %735, %v464
      %v737 = vpop.permute.xlu0 %736
      %739 = vset.pattern.permute.xlu0 3
      %740 = vperm.xlu0 %739, %v465
      %v741 = vpop.permute.xlu0 %740
      %743 = vset.pattern.permute.xlu0 3
      %744 = vperm.xlu0 %743, %v466
      %v745 = vpop.permute.xlu0 %744
      %747 = vset.pattern.permute.xlu0 3
      %748 = vperm.xlu0 %747, %v467
      %v749 = vpop.permute.xlu0 %748
      %751 = vset.pattern.permute.xlu0 3
      %752 = vperm.xlu0 %751, %v468
      %v753 = vpop.permute.xlu0 %752
      %v755 = vsub.f32 %v725, %v513
      %v756 = vsub.f32 %v729, %v513
      %v757 = vsub.f32 %v733, %v513
      %v758 = vsub.f32 %v737, %v513
      %v759 = vsub.f32 %v741, %v513
      %v760 = vsub.f32 %v745, %v513
      %v761 = vsub.f32 %v749, %v513
      %v762 = vsub.f32 %v753, %v513
      %v763 = vmul.f32 %v755, %v755
      %v764 = vmul.f32 %v756, %v756
      %v765 = vmul.f32 %v757, %v757
      %v766 = vmul.f32 %v758, %v758
      %v767 = vmul.f32 %v759, %v759
      %v768 = vmul.f32 %v760, %v760
      %v769 = vmul.f32 %v761, %v761
      %v770 = vmul.f32 %v762, %v762
      %v771 = vmul.f32 %v763, -4.0
      %v772 = vmul.f32 %v764, -4.0
      %v773 = vmul.f32 %v765, -4.0
      %v774 = vmul.f32 %v766, -4.0
      %v775 = vmul.f32 %v767, -4.0
      %v776 = vmul.f32 %v768, -4.0
      %v777 = vmul.f32 %v769, -4.0
      %v778 = vmul.f32 %v770, -4.0
      %v779 = vmul.f32 %v771, 1.442695
      %v780 = vpow.pop %v779
      %v781 = vmul.f32 %v772, 1.442695
      %v782 = vpow.pop %v781
      %v783 = vmul.f32 %v773, 1.442695
      %v784 = vpow.pop %v783
      %v785 = vmul.f32 %v774, 1.442695
      %v786 = vpow.pop %v785
      %v787 = vmul.f32 %v775, 1.442695
      %v788 = vpow.pop %v787
      %v789 = vmul.f32 %v776, 1.442695
      %v790 = vpow.pop %v789
      %v791 = vmul.f32 %v777, 1.442695
      %v792 = vpow.pop %v791
      %v793 = vmul.f32 %v778, 1.442695
      %v794 = vpow.pop %v793
      %v795 = vadd.f32 %v715, %v780
      %v796 = vadd.f32 %v716, %v782
      %v797 = vadd.f32 %v717, %v784
      %v798 = vadd.f32 %v718, %v786
      %v799 = vadd.f32 %v719, %v788
      %v800 = vadd.f32 %v720, %v790
      %v801 = vadd.f32 %v721, %v792
      %v802 = vadd.f32 %v722, %v794
      %803 = vset.pattern.permute.xlu0 4
      %804 = vperm.xlu0 %803, %v461
      %v805 = vpop.permute.xlu0 %804
      %807 = vset.pattern.permute.xlu0 4
      %808 = vperm.xlu0 %807, %v462
      %v809 = vpop.permute.xlu0 %808
      %811 = vset.pattern.permute.xlu0 4
      %812 = vperm.xlu0 %811, %v463
      %v813 = vpop.permute.xlu0 %812
      %815 = vset.pattern.permute.xlu0 4
      %816 = vperm.xlu0 %815, %v464
      %v817 = vpop.permute.xlu0 %816
      %819 = vset.pattern.permute.xlu0 4
      %820 = vperm.xlu0 %819, %v465
      %v821 = vpop.permute.xlu0 %820
      %823 = vset.pattern.permute.xlu0 4
      %824 = vperm.xlu0 %823, %v466
      %v825 = vpop.permute.xlu0 %824
      %827 = vset.pattern.permute.xlu0 4
      %828 = vperm.xlu0 %827, %v467
      %v829 = vpop.permute.xlu0 %828
      %831 = vset.pattern.permute.xlu0 4
      %832 = vperm.xlu0 %831, %v468
      %v833 = vpop.permute.xlu0 %832
      %v835 = vsub.f32 %v805, %v513
      %v836 = vsub.f32 %v809, %v513
      %v837 = vsub.f32 %v813, %v513
      %v838 = vsub.f32 %v817, %v513
      %v839 = vsub.f32 %v821, %v513
      %v840 = vsub.f32 %v825, %v513
      %v841 = vsub.f32 %v829, %v513
      %v842 = vsub.f32 %v833, %v513
      %v843 = vmul.f32 %v835, %v835
      %v844 = vmul.f32 %v836, %v836
      %v845 = vmul.f32 %v837, %v837
      %v846 = vmul.f32 %v838, %v838
      %v847 = vmul.f32 %v839, %v839
      %v848 = vmul.f32 %v840, %v840
      %v849 = vmul.f32 %v841, %v841
      %v850 = vmul.f32 %v842, %v842
      %v851 = vmul.f32 %v843, -4.0
      %v852 = vmul.f32 %v844, -4.0
      %v853 = vmul.f32 %v845, -4.0
      %v854 = vmul.f32 %v846, -4.0
      %v855 = vmul.f32 %v847, -4.0
      %v856 = vmul.f32 %v848, -4.0
      %v857 = vmul.f32 %v849, -4.0
      %v858 = vmul.f32 %v850, -4.0
      %v859 = vmul.f32 %v851, 1.442695
      %v860 = vpow.pop %v859
      %v861 = vmul.f32 %v852, 1.442695
      %v862 = vpow.pop %v861
      %v863 = vmul.f32 %v853, 1.442695
      %v864 = vpow.pop %v863
      %v865 = vmul.f32 %v854, 1.442695
      %v866 = vpow.pop %v865
      %v867 = vmul.f32 %v855, 1.442695
      %v868 = vpow.pop %v867
      %v869 = vmul.f32 %v856, 1.442695
      %v870 = vpow.pop %v869
      %v871 = vmul.f32 %v857, 1.442695
      %v872 = vpow.pop %v871
      %v873 = vmul.f32 %v858, 1.442695
      %v874 = vpow.pop %v873
      %v875 = vadd.f32 %v795, %v860
      %v876 = vadd.f32 %v796, %v862
      %v877 = vadd.f32 %v797, %v864
      %v878 = vadd.f32 %v798, %v866
      %v879 = vadd.f32 %v799, %v868
      %v880 = vadd.f32 %v800, %v870
      %v881 = vadd.f32 %v801, %v872
      %v882 = vadd.f32 %v802, %v874
      %883 = vset.pattern.permute.xlu0 5
      %884 = vperm.xlu0 %883, %v461
      %v885 = vpop.permute.xlu0 %884
      %887 = vset.pattern.permute.xlu0 5
      %888 = vperm.xlu0 %887, %v462
      %v889 = vpop.permute.xlu0 %888
      %891 = vset.pattern.permute.xlu0 5
      %892 = vperm.xlu0 %891, %v463
      %v893 = vpop.permute.xlu0 %892
      %895 = vset.pattern.permute.xlu0 5
      %896 = vperm.xlu0 %895, %v464
      %v897 = vpop.permute.xlu0 %896
      %899 = vset.pattern.permute.xlu0 5
      %900 = vperm.xlu0 %899, %v465
      %v901 = vpop.permute.xlu0 %900
      %903 = vset.pattern.permute.xlu0 5
      %904 = vperm.xlu0 %903, %v466
      %v905 = vpop.permute.xlu0 %904
      %907 = vset.pattern.permute.xlu0 5
      %908 = vperm.xlu0 %907, %v467
      %v909 = vpop.permute.xlu0 %908
      %911 = vset.pattern.permute.xlu0 5
      %912 = vperm.xlu0 %911, %v468
      %v913 = vpop.permute.xlu0 %912
      %v915 = vsub.f32 %v885, %v513
      %v916 = vsub.f32 %v889, %v513
      %v917 = vsub.f32 %v893, %v513
      %v918 = vsub.f32 %v897, %v513
      %v919 = vsub.f32 %v901, %v513
      %v920 = vsub.f32 %v905, %v513
      %v921 = vsub.f32 %v909, %v513
      %v922 = vsub.f32 %v913, %v513
      %v923 = vmul.f32 %v915, %v915
      %v924 = vmul.f32 %v916, %v916
      %v925 = vmul.f32 %v917, %v917
      %v926 = vmul.f32 %v918, %v918
      %v927 = vmul.f32 %v919, %v919
      %v928 = vmul.f32 %v920, %v920
      %v929 = vmul.f32 %v921, %v921
      %v930 = vmul.f32 %v922, %v922
      %v931 = vmul.f32 %v923, -4.0
      %v932 = vmul.f32 %v924, -4.0
      %v933 = vmul.f32 %v925, -4.0
      %v934 = vmul.f32 %v926, -4.0
      %v935 = vmul.f32 %v927, -4.0
      %v936 = vmul.f32 %v928, -4.0
      %v937 = vmul.f32 %v929, -4.0
      %v938 = vmul.f32 %v930, -4.0
      %v939 = vmul.f32 %v931, 1.442695
      %v940 = vpow.pop %v939
      %v941 = vmul.f32 %v932, 1.442695
      %v942 = vpow.pop %v941
      %v943 = vmul.f32 %v933, 1.442695
      %v944 = vpow.pop %v943
      %v945 = vmul.f32 %v934, 1.442695
      %v946 = vpow.pop %v945
      %v947 = vmul.f32 %v935, 1.442695
      %v948 = vpow.pop %v947
      %v949 = vmul.f32 %v936, 1.442695
      %v950 = vpow.pop %v949
      %v951 = vmul.f32 %v937, 1.442695
      %v952 = vpow.pop %v951
      %v953 = vmul.f32 %v938, 1.442695
      %v954 = vpow.pop %v953
      %v955 = vadd.f32 %v875, %v940
      %v956 = vadd.f32 %v876, %v942
      %v957 = vadd.f32 %v877, %v944
      %v958 = vadd.f32 %v878, %v946
      %v959 = vadd.f32 %v879, %v948
      %v960 = vadd.f32 %v880, %v950
      %v961 = vadd.f32 %v881, %v952
      %v962 = vadd.f32 %v882, %v954
      %963 = vset.pattern.permute.xlu0 6
      %964 = vperm.xlu0 %963, %v461
      %v965 = vpop.permute.xlu0 %964
      %967 = vset.pattern.permute.xlu0 6
      %968 = vperm.xlu0 %967, %v462
      %v969 = vpop.permute.xlu0 %968
      %971 = vset.pattern.permute.xlu0 6
      %972 = vperm.xlu0 %971, %v463
      %v973 = vpop.permute.xlu0 %972
      %975 = vset.pattern.permute.xlu0 6
      %976 = vperm.xlu0 %975, %v464
      %v977 = vpop.permute.xlu0 %976
      %979 = vset.pattern.permute.xlu0 6
      %980 = vperm.xlu0 %979, %v465
      %v981 = vpop.permute.xlu0 %980
      %983 = vset.pattern.permute.xlu0 6
      %984 = vperm.xlu0 %983, %v466
      %v985 = vpop.permute.xlu0 %984
      %987 = vset.pattern.permute.xlu0 6
      %988 = vperm.xlu0 %987, %v467
      %v989 = vpop.permute.xlu0 %988
      %991 = vset.pattern.permute.xlu0 6
      %992 = vperm.xlu0 %991, %v468
      %v993 = vpop.permute.xlu0 %992
      %v995 = vsub.f32 %v965, %v513
      %v996 = vsub.f32 %v969, %v513
      %v997 = vsub.f32 %v973, %v513
      %v998 = vsub.f32 %v977, %v513
      %v999 = vsub.f32 %v981, %v513
      %v1000 = vsub.f32 %v985, %v513
      %v1001 = vsub.f32 %v989, %v513
      %v1002 = vsub.f32 %v993, %v513
      %v1003 = vmul.f32 %v995, %v995
      %v1004 = vmul.f32 %v996, %v996
      %v1005 = vmul.f32 %v997, %v997
      %v1006 = vmul.f32 %v998, %v998
      %v1007 = vmul.f32 %v999, %v999
      %v1008 = vmul.f32 %v1000, %v1000
      %v1009 = vmul.f32 %v1001, %v1001
      %v1010 = vmul.f32 %v1002, %v1002
      %v1011 = vmul.f32 %v1003, -4.0
      %v1012 = vmul.f32 %v1004, -4.0
      %v1013 = vmul.f32 %v1005, -4.0
      %v1014 = vmul.f32 %v1006, -4.0
      %v1015 = vmul.f32 %v1007, -4.0
      %v1016 = vmul.f32 %v1008, -4.0
      %v1017 = vmul.f32 %v1009, -4.0
      %v1018 = vmul.f32 %v1010, -4.0
      %v1019 = vmul.f32 %v1011, 1.442695
      %v1020 = vpow.pop %v1019
      %v1021 = vmul.f32 %v1012, 1.442695
      %v1022 = vpow.pop %v1021
      %v1023 = vmul.f32 %v1013, 1.442695
      %v1024 = vpow.pop %v1023
      %v1025 = vmul.f32 %v1014, 1.442695
      %v1026 = vpow.pop %v1025
      %v1027 = vmul.f32 %v1015, 1.442695
      %v1028 = vpow.pop %v1027
      %v1029 = vmul.f32 %v1016, 1.442695
      %v1030 = vpow.pop %v1029
      %v1031 = vmul.f32 %v1017, 1.442695
      %v1032 = vpow.pop %v1031
      %v1033 = vmul.f32 %v1018, 1.442695
      %v1034 = vpow.pop %v1033
      %v1035 = vadd.f32 %v955, %v1020
      %v1036 = vadd.f32 %v956, %v1022
      %v1037 = vadd.f32 %v957, %v1024
      %v1038 = vadd.f32 %v958, %v1026
      %v1039 = vadd.f32 %v959, %v1028
      %v1040 = vadd.f32 %v960, %v1030
      %v1041 = vadd.f32 %v961, %v1032
      %v1042 = vadd.f32 %v962, %v1034
      %1043 = vset.pattern.permute.xlu0 7
      %1044 = vperm.xlu0 %1043, %v461
      %v1045 = vpop.permute.xlu0 %1044
      %1047 = vset.pattern.permute.xlu0 7
      %1048 = vperm.xlu0 %1047, %v462
      %v1049 = vpop.permute.xlu0 %1048
      %1051 = vset.pattern.permute.xlu0 7
      %1052 = vperm.xlu0 %1051, %v463
      %v1053 = vpop.permute.xlu0 %1052
      %1055 = vset.pattern.permute.xlu0 7
      %1056 = vperm.xlu0 %1055, %v464
      %v1057 = vpop.permute.xlu0 %1056
      %1059 = vset.pattern.permute.xlu0 7
      %1060 = vperm.xlu0 %1059, %v465
      %v1061 = vpop.permute.xlu0 %1060
      %1063 = vset.pattern.permute.xlu0 7
      %1064 = vperm.xlu0 %1063, %v466
      %v1065 = vpop.permute.xlu0 %1064
      %1067 = vset.pattern.permute.xlu0 7
      %1068 = vperm.xlu0 %1067, %v467
      %v1069 = vpop.permute.xlu0 %1068
      %1071 = vset.pattern.permute.xlu0 7
      %1072 = vperm.xlu0 %1071, %v468
      %v1073 = vpop.permute.xlu0 %1072
      %v1075 = vsub.f32 %v1045, %v513
      %v1076 = vsub.f32 %v1049, %v513
      %v1077 = vsub.f32 %v1053, %v513
      %v1078 = vsub.f32 %v1057, %v513
      %v1079 = vsub.f32 %v1061, %v513
      %v1080 = vsub.f32 %v1065, %v513
      %v1081 = vsub.f32 %v1069, %v513
      %v1082 = vsub.f32 %v1073, %v513
      %v1083 = vmul.f32 %v1075, %v1075
      %v1084 = vmul.f32 %v1076, %v1076
      %v1085 = vmul.f32 %v1077, %v1077
      %v1086 = vmul.f32 %v1078, %v1078
      %v1087 = vmul.f32 %v1079, %v1079
      %v1088 = vmul.f32 %v1080, %v1080
      %v1089 = vmul.f32 %v1081, %v1081
      %v1090 = vmul.f32 %v1082, %v1082
      %v1091 = vmul.f32 %v1083, -4.0
      %v1092 = vmul.f32 %v1084, -4.0
      %v1093 = vmul.f32 %v1085, -4.0
      %v1094 = vmul.f32 %v1086, -4.0
      %v1095 = vmul.f32 %v1087, -4.0
      %v1096 = vmul.f32 %v1088, -4.0
      %v1097 = vmul.f32 %v1089, -4.0
      %v1098 = vmul.f32 %v1090, -4.0
      %v1099 = vmul.f32 %v1091, 1.442695
      %v1100 = vpow.pop %v1099
      %v1101 = vmul.f32 %v1092, 1.442695
      %v1102 = vpow.pop %v1101
      %v1103 = vmul.f32 %v1093, 1.442695
      %v1104 = vpow.pop %v1103
      %v1105 = vmul.f32 %v1094, 1.442695
      %v1106 = vpow.pop %v1105
      %v1107 = vmul.f32 %v1095, 1.442695
      %v1108 = vpow.pop %v1107
      %v1109 = vmul.f32 %v1096, 1.442695
      %v1110 = vpow.pop %v1109
      %v1111 = vmul.f32 %v1097, 1.442695
      %v1112 = vpow.pop %v1111
      %v1113 = vmul.f32 %v1098, 1.442695
      %v1114 = vpow.pop %v1113
      %v1115 = vadd.f32 %v1035, %v1100
      %v1116 = vadd.f32 %v1036, %v1102
      %v1117 = vadd.f32 %v1037, %v1104
      %v1118 = vadd.f32 %v1038, %v1106
      %v1119 = vadd.f32 %v1039, %v1108
      %v1120 = vadd.f32 %v1040, %v1110
      %v1121 = vadd.f32 %v1041, %v1112
      %v1122 = vadd.f32 %v1042, %v1114
      %1123 = vrot.lane.b32.xlu0 %v461, 8
      %v1124 = vpop.permute.xlu0 %1123
      %1125 = vrot.lane.b32.xlu0 %v462, 8
      %v1126 = vpop.permute.xlu0 %1125
      %1127 = vrot.lane.b32.xlu0 %v463, 8
      %v1128 = vpop.permute.xlu0 %1127
      %1129 = vrot.lane.b32.xlu0 %v464, 8
      %v1130 = vpop.permute.xlu0 %1129
      %1131 = vrot.lane.b32.xlu0 %v465, 8
      %v1132 = vpop.permute.xlu0 %1131
      %1133 = vrot.lane.b32.xlu0 %v466, 8
      %v1134 = vpop.permute.xlu0 %1133
      %1135 = vrot.lane.b32.xlu0 %v467, 8
      %v1136 = vpop.permute.xlu0 %1135
      %1137 = vrot.lane.b32.xlu0 %v468, 8
      %v1138 = vpop.permute.xlu0 %1137
    $region34: #{tpu_custom_call.1} parent=1 // loop_footer
      %s452 = sadd.s32 1, %s448
    $region35: #{tpu_custom_call.1} parent=1 // loop_footer_branch
      %447 = sbr.rel target = $region31
    $region36: #{tpu_custom_call.1} parent=1 // loop_exit
      _
    %v1139 = vpack.c.bf16 %v454, %v453
    %v1140 = vpack.c.bf16 %v456, %v455
    %v1141 = vpack.c.bf16 %v458, %v457
    %v1142 = vpack.c.bf16 %v460, %v459
    %v1143 = vld [vmem:[%s3] sm:$0xf]
    %v1144 = vld [vmem:[%s3 + $0x4] sm:$0xf]
    %v1145 = vld [vmem:[%s3 + $0x8] sm:$0xf]
    %v1146 = vld [vmem:[%s3 + $0xc] sm:$0xf]
    %v1147 = vld [vmem:[%s3 + $0x10] sm:$0xf]
    %v1148 = vld [vmem:[%s3 + $0x14] sm:$0xf]
    %v1149 = vld [vmem:[%s3 + $0x18] sm:$0xf]
    %v1150 = vld [vmem:[%s3 + $0x1c] sm:$0xf]
    %v1151 = vld [vmem:[%s3 + $0x20] sm:$0xf]
    %v1152 = vld [vmem:[%s3 + $0x24] sm:$0xf]
    %v1153 = vld [vmem:[%s3 + $0x28] sm:$0xf]
    %v1154 = vld [vmem:[%s3 + $0x2c] sm:$0xf]
    %v1155 = vld [vmem:[%s3 + $0x30] sm:$0xf]
    %v1156 = vld [vmem:[%s3 + $0x34] sm:$0xf]
    %v1157 = vld [vmem:[%s3 + $0x38] sm:$0xf]
    %v1158 = vld [vmem:[%s3 + $0x3c] sm:$0xf]
    %v1159 = vld [vmem:[%s4] sm:$0x1]
    %v1161 = vlaneseq
    %v1162 = vshrl.u32 %v1161, 7
    %v1163 = vsub.s32 0, %v1162
    %v1164 = vrot.slane %v1159, %v1163
    %v1182 = vunpack.c.l.b16 %v1143
    %v1183 = vunpack.c.l.b16 %v1144
    %v1184 = vunpack.c.l.b16 %v1145
    %v1185 = vunpack.c.l.b16 %v1146
    %v1186 = vunpack.c.l.b16 %v1147
    %v1187 = vunpack.c.l.b16 %v1148
    %v1188 = vunpack.c.l.b16 %v1149
    %v1189 = vunpack.c.l.b16 %v1150
    %v1190 = vunpack.c.l.b16 %v1151
    %v1191 = vunpack.c.l.b16 %v1152
    %v1192 = vunpack.c.l.b16 %v1153
    %v1193 = vunpack.c.l.b16 %v1154
    %v1194 = vunpack.c.l.b16 %v1155
    %v1195 = vunpack.c.l.b16 %v1156
    %v1196 = vunpack.c.l.b16 %v1157
    %v1197 = vunpack.c.l.b16 %v1158
    %v1198 = vpack.c.b16 %v1183, %v1182
    %v1199 = vpack.c.b16 %v1185, %v1184
    %v1200 = vpack.c.b16 %v1187, %v1186
    %v1201 = vpack.c.b16 %v1189, %v1188
    %v1202 = vpack.c.b16 %v1191, %v1190
    %v1203 = vpack.c.b16 %v1193, %v1192
    %v1204 = vpack.c.b16 %v1195, %v1194
    %v1205 = vpack.c.b16 %v1197, %v1196
    %1214 = vmatprep.subr.bf16.mxu0 0
    %1215 = vmatpush1.bf16.msra.mxu0 %v1205
    %1216 = vmatprep.subr.bf16.mxu0 0
    %1217 = vmatpush1.bf16.msra.mxu0 %v1204
    %1218 = vmatprep.subr.bf16.mxu0 0
    %1219 = vmatpush1.bf16.msra.mxu0 %v1203
    %1220 = vmatprep.subr.bf16.mxu0 0
    %1221 = vmatpush1.bf16.msra.mxu0 %v1202
    %1222 = vmatprep.subr.bf16.mxu0 0
    %1223 = vmatpush1.bf16.msra.mxu0 %v1201
    %1224 = vmatprep.subr.bf16.mxu0 0
    %1225 = vmatpush1.bf16.msra.mxu0 %v1200
    %1226 = vmatprep.subr.bf16.mxu0 0
    %1227 = vmatpush1.bf16.msra.mxu0 %v1199
    %1228 = vmatprep.subr.bf16.mxu0 0
    %1229 = vmatpush1.bf16.msra.mxu0 %v1198
    %1230 = vmatprep.subr.bf16.mxu0 0
    %1231 = vmatpush2.bf16.msra.mxu0 0
    %1232 = vmatprep.subr.bf16.mxu0 0
    %1233 = vmatpush2.bf16.msra.mxu0 0
    %1234 = vmatprep.subr.bf16.mxu0 0
    %1235 = vmatpush2.bf16.msra.mxu0 0
    %1236 = vmatprep.subr.bf16.mxu0 0
    %1237 = vmatpush2.bf16.msra.mxu0 0
    %1238 = vmatprep.subr.bf16.mxu0 0
    %1239 = vmatpush2.bf16.msra.mxu0 0
    %1240 = vmatprep.subr.bf16.mxu0 0
    %1241 = vmatpush2.bf16.msra.mxu0 0
    %1242 = vmatprep.subr.bf16.mxu0 0
    %1243 = vmatpush2.bf16.msra.mxu0 0
    %1244 = vmatprep.subr.bf16.mxu0 0
    %1245 = vmatpush2.bf16.msra.mxu0 0
    %1246 = vmatprep.mubr.bf16.mxu0 0
    %1247 = vmatmul.mubr.bf16.gmra.mxu0 %v1139
    %v1248 = vpop.f32.mrf.mxu0
    %v1249 = vadd.f32 %v1164, %v1248
    %v1250 = vpop.f32.mrf.mxu0
    %v1251 = vpop.f32.mrf.mxu0
    %v1252 = vadd.f32 %v1164, %v1251
    %v1253 = vpop.f32.mrf.mxu0
    %1254 = vmatprep.mubr.bf16.mxu0 0
    %1255 = vmatmul.mubr.bf16.gmra.mxu0 %v1140
    %v1256 = vpop.f32.mrf.mxu0
    %v1257 = vadd.f32 %v1164, %v1256
    %v1258 = vpop.f32.mrf.mxu0
    %v1259 = vpop.f32.mrf.mxu0
    %v1260 = vadd.f32 %v1164, %v1259
    %v1261 = vpop.f32.mrf.mxu0
    %1262 = vmatprep.mubr.bf16.mxu0 0
    %1263 = vmatmul.mubr.bf16.gmra.mxu0 %v1141
    %v1264 = vpop.f32.mrf.mxu0
    %v1265 = vadd.f32 %v1164, %v1264
    %v1266 = vpop.f32.mrf.mxu0
    %v1267 = vpop.f32.mrf.mxu0
    %v1268 = vadd.f32 %v1164, %v1267
    %v1269 = vpop.f32.mrf.mxu0
    %1270 = vmatprep.mubr.bf16.mxu0 0
    %1271 = vmatmul.mubr.bf16.gmra.mxu0 %v1142
    %v1272 = vpop.f32.mrf.mxu0
    %v1273 = vadd.f32 %v1164, %v1272
    %v1274 = vpop.f32.mrf.mxu0
    %v1275 = vpop.f32.mrf.mxu0
    %v1276 = vadd.f32 %v1164, %v1275
    %v1277 = vpop.f32.mrf.mxu0
    %1278 = vdwg.mxu0
    %v1279 = vmax.f32 %v1249, 0.0
    %v1280 = vmax.f32 %v1252, 0.0
    %v1281 = vmax.f32 %v1257, 0.0
    %v1282 = vmax.f32 %v1260, 0.0
    %v1283 = vmax.f32 %v1265, 0.0
    %v1284 = vmax.f32 %v1268, 0.0
    %v1285 = vmax.f32 %v1273, 0.0
    %v1286 = vmax.f32 %v1276, 0.0
    %v1287 = vpack.c.bf16 %v1280, %v1279
    %v1288 = vpack.c.bf16 %v1282, %v1281
    %v1289 = vpack.c.bf16 %v1284, %v1283
    %v1290 = vpack.c.bf16 %v1286, %v1285
    %v1291 = vld [vmem:[#allocation2] sm:$0xf]
    %v1292 = vld [vmem:[#allocation2 + $0x4] sm:$0xf]
    %v1293 = vld [vmem:[#allocation2 + $0x8] sm:$0xf]
    %v1294 = vld [vmem:[#allocation2 + $0xc] sm:$0xf]
    %v1295 = vld [vmem:[#allocation2 + $0x10] sm:$0xf]
    %v1296 = vld [vmem:[#allocation2 + $0x14] sm:$0xf]
    %v1297 = vld [vmem:[#allocation2 + $0x18] sm:$0xf]
    %v1298 = vld [vmem:[#allocation2 + $0x1c] sm:$0xf]
    %v1299 = vld [vmem:[#allocation2 + $0x20] sm:$0xf]
    %v1300 = vld [vmem:[#allocation2 + $0x24] sm:$0xf]
    %v1301 = vld [vmem:[#allocation2 + $0x28] sm:$0xf]
    %v1302 = vld [vmem:[#allocation2 + $0x2c] sm:$0xf]
    %v1303 = vld [vmem:[#allocation2 + $0x30] sm:$0xf]
    %v1304 = vld [vmem:[#allocation2 + $0x34] sm:$0xf]
    %v1305 = vld [vmem:[#allocation2 + $0x38] sm:$0xf]
    %v1306 = vld [vmem:[#allocation2 + $0x3c] sm:$0xf]
    %v1323 = vunpack.c.l.b16 %v1291
    %v1324 = vunpack.c.l.b16 %v1292
    %v1325 = vunpack.c.l.b16 %v1293
    %v1326 = vunpack.c.l.b16 %v1294
    %v1327 = vunpack.c.l.b16 %v1295
    %v1328 = vunpack.c.l.b16 %v1296
    %v1329 = vunpack.c.l.b16 %v1297
    %v1330 = vunpack.c.l.b16 %v1298
    %v1331 = vunpack.c.l.b16 %v1299
    %v1332 = vunpack.c.l.b16 %v1300
    %v1333 = vunpack.c.l.b16 %v1301
    %v1334 = vunpack.c.l.b16 %v1302
    %v1335 = vunpack.c.l.b16 %v1303
    %v1336 = vunpack.c.l.b16 %v1304
    %v1337 = vunpack.c.l.b16 %v1305
    %v1338 = vunpack.c.l.b16 %v1306
    %v1339 = vpack.c.b16 %v1324, %v1323
    %v1340 = vpack.c.b16 %v1326, %v1325
    %v1341 = vpack.c.b16 %v1328, %v1327
    %v1342 = vpack.c.b16 %v1330, %v1329
    %v1343 = vpack.c.b16 %v1332, %v1331
    %v1344 = vpack.c.b16 %v1334, %v1333
    %v1345 = vpack.c.b16 %v1336, %v1335
    %v1346 = vpack.c.b16 %v1338, %v1337
    %1355 = vmatprep.subr.bf16.mxu0 0
    %1356 = vmatpush1.bf16.msra.mxu0 %v1346
    %1357 = vmatprep.subr.bf16.mxu0 0
    %1358 = vmatpush1.bf16.msra.mxu0 %v1345
    %1359 = vmatprep.subr.bf16.mxu0 0
    %1360 = vmatpush1.bf16.msra.mxu0 %v1344
    %1361 = vmatprep.subr.bf16.mxu0 0
    %1362 = vmatpush1.bf16.msra.mxu0 %v1343
    %1363 = vmatprep.subr.bf16.mxu0 0
    %1364 = vmatpush1.bf16.msra.mxu0 %v1342
    %1365 = vmatprep.subr.bf16.mxu0 0
    %1366 = vmatpush1.bf16.msra.mxu0 %v1341
    %1367 = vmatprep.subr.bf16.mxu0 0
    %1368 = vmatpush1.bf16.msra.mxu0 %v1340
    %1369 = vmatprep.subr.bf16.mxu0 0
    %1370 = vmatpush1.bf16.msra.mxu0 %v1339
    %1371 = vmatprep.subr.bf16.mxu0 0
    %1372 = vmatpush2.bf16.msra.mxu0 0
    %1373 = vmatprep.subr.bf16.mxu0 0
    %1374 = vmatpush2.bf16.msra.mxu0 0
    %1375 = vmatprep.subr.bf16.mxu0 0
    %1376 = vmatpush2.bf16.msra.mxu0 0
    %1377 = vmatprep.subr.bf16.mxu0 0
    %1378 = vmatpush2.bf16.msra.mxu0 0
    %1379 = vmatprep.subr.bf16.mxu0 0
    %1380 = vmatpush2.bf16.msra.mxu0 0
    %1381 = vmatprep.subr.bf16.mxu0 0
    %1382 = vmatpush2.bf16.msra.mxu0 0
    %1383 = vmatprep.subr.bf16.mxu0 0
    %1384 = vmatpush2.bf16.msra.mxu0 0
    %1385 = vmatprep.subr.bf16.mxu0 0
    %1386 = vmatpush2.bf16.msra.mxu0 0
    %1387 = vmatprep.mubr.bf16.mxu0 0
    %1388 = vmatmul.mubr.bf16.gmra.mxu0 %v1287
    %v1389 = vpop.f32.mrf.mxu0
    %v1390 = vadd.f32 0.0, %v1389
    %v1391 = vpop.f32.mrf.mxu0
    %v1392 = vpop.f32.mrf.mxu0
    %v1393 = vadd.f32 0.0, %v1392
    %v1394 = vpop.f32.mrf.mxu0
    %1395 = vmatprep.mubr.bf16.mxu0 0
    %1396 = vmatmul.mubr.bf16.gmra.mxu0 %v1288
    %v1397 = vpop.f32.mrf.mxu0
    %v1398 = vadd.f32 0.0, %v1397
    %v1399 = vpop.f32.mrf.mxu0
    %v1400 = vpop.f32.mrf.mxu0
    %v1401 = vadd.f32 0.0, %v1400
    %v1402 = vpop.f32.mrf.mxu0
    %1403 = vmatprep.mubr.bf16.mxu0 0
    %1404 = vmatmul.mubr.bf16.gmra.mxu0 %v1289
    %v1405 = vpop.f32.mrf.mxu0
    %v1406 = vadd.f32 0.0, %v1405
    %v1407 = vpop.f32.mrf.mxu0
    %v1408 = vpop.f32.mrf.mxu0
    %v1409 = vadd.f32 0.0, %v1408
    %v1410 = vpop.f32.mrf.mxu0
    %1411 = vmatprep.mubr.bf16.mxu0 0
    %1412 = vmatmul.mubr.bf16.gmra.mxu0 %v1290
    %v1413 = vpop.f32.mrf.mxu0
    %v1414 = vadd.f32 0.0, %v1413
    %v1415 = vpop.f32.mrf.mxu0
    %v1416 = vpop.f32.mrf.mxu0
    %v1417 = vadd.f32 0.0, %v1416
    %v1418 = vpop.f32.mrf.mxu0
    %1419 = vdwg.mxu0
    %1420 = vst [vmem:[#allocation5] sm:$0xff] %v1390
    %1421 = vst [vmem:[#allocation5 + $0x8] sm:$0xff] %v1393
    %1422 = vst [vmem:[#allocation5 + $0x10] sm:$0xff] %v1398
    %1423 = vst [vmem:[#allocation5 + $0x18] sm:$0xff] %v1401
    %1424 = vst [vmem:[#allocation5 + $0x20] sm:$0xff] %v1406
    %1425 = vst [vmem:[#allocation5 + $0x28] sm:$0xff] %v1409
    %1426 = vst [vmem:[#allocation5 + $0x30] sm:$0xff] %v1414
    %1427 = vst [vmem:[#allocation5 + $0x38] sm:$0xff] %v1417
    // Predicated region
    $region37: #{tpu_custom_call.1} parent=1 // pred_check
      _
    $region38: #{tpu_custom_call.1} parent=1 // pred_check_branch
      %1429 = sbr.rel (0) target = $region40
    $region39: #{tpu_custom_call.1} parent=1 // pred_region
      %s1431 = ssub.s32 1024, 1024
      %1432 = vsyncadd [#allocation4], %s1431
      %s1433 = sshll.u32 [#allocation5], 4
      %s1434 = int_to_ptr.vmem [resolvable:$true] %s1433
      %1439 = dma.vmem_to_hbm [thread:$0]  %s1434, 1024, %s6, [#allocation4], 128, 128, 8
    $region40: #{tpu_custom_call.1} parent=1 // pred_fallthru
      _
    // Predicated region
    $region41: #{tpu_custom_call.1} parent=1 // pred_check
      _
    $region42: #{tpu_custom_call.1} parent=1 // pred_check_branch
      %1441 = sbr.rel (0) target = $region44
    $region43: #{tpu_custom_call.1} parent=1 // pred_region
      %1442 = dma.done [#allocation4], 1024
    $region44: #{tpu_custom_call.1} parent=1 // pred_fallthru
      _
    %1443 = vsyncpa [#allocation3], 1
    %1444 = vsyncpa [#allocation4], 1

</llo_original>
